<compile_context>
chip_gen: v5e
topology: v5e:2x2
jax: 0.10.0
libtpu: 0.0.40
codegen_flags: <defaults>
</compile_context>

<pallas_src>
import math

import jax
import jax.numpy as jnp
from jax import lax
from jax.experimental import pallas as pl
from jax.experimental.pallas import tpu as pltpu

# ----- module hyper-params (small, TPU-friendly, consistent with the module) --
D_MODEL = 128          # d_model      (channels of x0 / Conv1d in)
D_OUT = 128            # d_model_out
NHEAD = 4
HEAD_DIM = D_OUT // NHEAD
DIM_FF = 256           # dim_feedforward
LN_EPS = 1e-5          # nn.LayerNorm default

_F32 = jnp.float32
_BF16 = jnp.bfloat16


def _layer_norm(x, g, b):
    mu = jnp.mean(x, axis=-1, keepdims=True)
    var = jnp.mean(jnp.square(x - mu), axis=-1, keepdims=True)
    return (x - mu) * lax.rsqrt(var + LN_EPS) * g + b


def _dot_nt(a, b):
    """a:(m,d) x b:(n,d) -> (m,n), contract last dims, f32 accumulation."""
    return lax.dot_general(a, b, (((1,), (1,)), ((), ())),
                           preferred_element_type=_F32)


def _gdp_kernel(
    idx_ref,                       # SMEM (B, K) int32   FPS indices (prefetch)
    x0_ref,                        # VMEM (N, Cin) f32   encoded points (src2)
    wproj_ref, bproj_ref,          # conv1x1 input_proj (bf16 W, f32 b)
    g13_ref, b13_ref,              # norm13
    wq_ref, bq_ref,                # query proj (1/sqrt(dh) folded into W, b)
    wkv_ref, bkv_ref,              # fused [Wk | Wv] for the kv stream
    wo_ref, bo_ref,                # attention out-proj
    g12_ref, b12_ref,              # norm12
    w11_ref, b11_ref,              # FFN linear11
    w12_ref, b12f_ref,             # FFN linear12
    out_ref,                       # (K, Cin + C) = [x_g0 | cross_transformer]
    proj_sc,                       # VMEM (N, C)   f32  projected + normed src2
    raw_sc,                        # VMEM (K, Cin) f32  gathered raw x_g0 rows
    s1_sc,                         # VMEM (K, C)   f32  gathered normed queries
    logit_sc,                      # VMEM (H*K, N) f32  per-head logits
):
    b = pl.program_id(0)
    N, Cin = x0_ref.shape
    K = raw_sc.shape[0]
    C, H, dh = D_OUT, NHEAD, HEAD_DIM

    x_all = x0_ref[...].astype(_F32)                               # (N, Cin)

    # -- input_proj (Conv1d k=1) + norm13 once for ALL N source rows; the K
    #    query rows are a subset and are gathered from the normed result.
    proj = jnp.dot(x_all.astype(_BF16), wproj_ref[...],
                   preferred_element_type=_F32) + bproj_ref[...]
    proj = _layer_norm(proj, g13_ref[...], b13_ref[...])           # (N, C) f32
    proj_sc[...] = proj

    # -- scalar-prefetch gather of the K sampled rows (bit-exact copies).
    @pl.loop(0, K)
    def _(i):
        j = idx_ref[b, i]
        raw_sc[pl.ds(i, 1), :] = x0_ref[pl.ds(j, 1), :]
        s1_sc[pl.ds(i, 1), :] = proj_sc[pl.ds(j, 1), :]

    out_ref[:, :Cin] = raw_sc[...].astype(out_ref.dtype)
    s1 = s1_sc[...]                                                # (K, C) f32

    # -- split QKV: q only for the K query rows, k/v only for the N kv rows.
    q = (jnp.dot(s1.astype(_BF16), wq_ref[...],
                 preferred_element_type=_F32) + bq_ref[...]).astype(_BF16)
    kv = jnp.dot(proj.astype(_BF16), wkv_ref[...],
                 preferred_element_type=_F32) + bkv_ref[...]       # (N, 2C)
    k = kv[:, :C].astype(_BF16)
    v = kv[:, C:].astype(_BF16)

    # -- multi-head cross attention: per-head logits go straight into a VMEM
    #    scratch (sublane-stacked) -> ONE fused softmax, no concat copy.
    # TODO(synk): at real sizes (N~2048, K~512) tile the kv axis here with an
    # online softmax so logits/p fit v7x VMEM and kv DMA overlaps MXU work.
    for h in range(H):
        logit_sc[h * K:(h + 1) * K, :] = _dot_nt(
            q[:, h * dh:(h + 1) * dh], k[:, h * dh:(h + 1) * dh])

    logits = logit_sc[...]                                         # (H*K, N)
    logits = logits - jnp.max(logits, axis=-1, keepdims=True)
    p = jnp.exp(logits)
    p = p * pl.reciprocal(jnp.sum(p, axis=-1, keepdims=True))      # exact
    p = p.astype(_BF16)

    # -- per-head p @ v, lane-concat to (K, C), then ONE out-proj matmul with
    #    contraction C=128 (full MXU rows) instead of 4 matmuls with dh=32.
    pv = jnp.concatenate(
        [jnp.dot(p[h * K:(h + 1) * K, :], v[:, h * dh:(h + 1) * dh],
                 preferred_element_type=_F32) for h in range(H)], axis=1)
    attn = jnp.dot(pv.astype(_BF16), wo_ref[...],
                   preferred_element_type=_F32) + bo_ref[...]      # (K, C)

    # -- residual + norm12 (dropout p=0.0 -> identity)
    s1 = _layer_norm(s1 + attn, g12_ref[...], b12_ref[...])

    # -- FFN: linear12(GELU(linear11(x))) + residual (no norm after)
    h1 = jnp.dot(s1.astype(_BF16), w11_ref[...],
                 preferred_element_type=_F32) + b11_ref[...]
    # TODO(synk): PyTorch nn.GELU default is exact erf; tanh approximation is
    # used in-kernel (<~1e-3 abs diff) since erf lowering is not guaranteed.
    h1 = jax.nn.gelu(h1, approximate=True)
    h2 = jnp.dot(h1.astype(_BF16), w12_ref[...],
                 preferred_element_type=_F32) + b12f_ref[...]

    out_ref[:, Cin:] = (s1 + h2).astype(out_ref.dtype)


# --------------------------- pallas_call wrapper ------------------------------
_PARAM_ORDER = ("wproj", "bproj", "g13", "b13", "wq", "bq", "wkv", "bkv",
                "wo", "bo", "g12", "b12", "w11", "b11", "w12", "b12f")


def _param_spec(p):
    nd = p.ndim
    # index_map receives (grid_idx, *prefetch_refs); constant block index ->
    # weights stay VMEM-resident across grid steps.
    return pl.BlockSpec(p.shape, lambda b, idx, _nd=nd: (0,) * _nd)


def gdp_fused_pallas(x0_nwc, idx, packed):
    """x0_nwc: (B, N, Cin) f32, idx: (B, K) int32 -> (B, K, Cin + D_OUT)."""
    B, N, Cin = x0_nwc.shape
    K = idx.shape[1]
    plist = [packed[name] for name in _PARAM_ORDER]

    in_specs = [
        pl.BlockSpec((None, N, Cin), lambda b, idx_ref: (b, 0, 0)),
    ] + [_param_spec(p) for p in plist]

    grid_spec = pltpu.PrefetchScalarGridSpec(
        num_scalar_prefetch=1,            # idx -> SMEM, read as scalars
        grid=(B,),
        in_specs=in_specs,
        out_specs=pl.BlockSpec((None, K, Cin + D_OUT),
                               lambda b, idx_ref: (b, 0, 0)),
        scratch_shapes=[
            pltpu.VMEM((N, D_OUT), jnp.float32),       # proj_sc
            pltpu.VMEM((K, Cin), jnp.float32),         # raw_sc
            pltpu.VMEM((K, D_OUT), jnp.float32),       # s1_sc
            pltpu.VMEM((NHEAD * K, N), jnp.float32),   # logit_sc
        ])

    return pl.pallas_call(
        _gdp_kernel,
        out_shape=jax.ShapeDtypeStruct((B, K, Cin + D_OUT), jnp.float32),
        grid_spec=grid_spec,
        compiler_params=pltpu.CompilerParams(
            # B splits across v7x's two TensorCores (no-op on v5e/v6e).  If
            # real workloads use B == 1, add a second parallel axis over K.
            dimension_semantics=("parallel",),
            # Toy sizes need <1 MiB; raise further (or use kv tiling) for
            # real PointAttN sizes.
            vmem_limit_bytes=32 * 1024 * 1024),
    )(idx.astype(jnp.int32), x0_nwc, *plist)


# ------------------------- FPS (plain-JAX glue) -------------------------------
# TODO(synk): farthest-point sampling is an iterative, data-dependent argmax;
# it stays in plain JAX (lax.fori_loop).  At real K~512 this serial loop may
# dominate wall clock and would deserve its own VMEM-resident Pallas kernel.
def farthest_point_sampling(pts_bn3, k):
    """pts: (B, N, 3) -> (sampled (B, K, 3), idx (B, K)).  Starts at index 0."""
    B, N, _ = pts_bn3.shape

    def one(p):
        def body(i, carry):
            idxs, dmin, last = carry
            d = jnp.sum((p - p[last]) ** 2, axis=-1)
            dmin = jnp.minimum(dmin, d)
            nxt = jnp.argmax(dmin).astype(jnp.int32)
            idxs = idxs.at[i].set(nxt)
            return idxs, dmin, nxt

        idxs0 = jnp.zeros((k,), jnp.int32)
        dmin0 = jnp.full((N,), jnp.inf, dtype=p.dtype)
        idxs, _, _ = lax.fori_loop(1, k, body, (idxs0, dmin0, jnp.int32(0)))
        return idxs

    idx = jax.vmap(one)(pts_bn3)                                    # (B, K)
    sampled = jnp.take_along_axis(pts_bn3, idx[..., None], axis=1)  # (B, K, 3)
    return sampled, idx


def gdp_forward(packed_params, x0, points, k_samples):
    """x0: (B, D_MODEL, N), points: (B, 3, N)
       -> (x1 (B, D_MODEL + D_OUT, K), points (B, 3, K))."""
    pts_bn3 = jnp.transpose(points, (0, 2, 1))                  # (B, N, 3)
    sampled, idx = farthest_point_sampling(pts_bn3, k_samples)
    points_out = jnp.transpose(sampled, (0, 2, 1))              # (B, 3, K)

    x0_nwc = jnp.transpose(x0, (0, 2, 1))       # single transpose; serves as
                                                # both gather source and src2
    fused = gdp_fused_pallas(x0_nwc, idx, packed_params)        # (B, K, Cin+C)
    x1 = jnp.transpose(fused, (0, 2, 1))        # == cat([x_g0, x1_ct], dim=1)
    return x1, points_out


# ------------------------- deterministic parameter init ----------------------
def init_params(key):
    ks = jax.random.split(key, 8)

    def w(k, shape, fan_in):
        return jax.random.normal(k, shape, jnp.float32) / math.sqrt(fan_in)

    C, F, Cin = D_OUT, DIM_FF, D_MODEL
    return {
        # input_proj: Conv1d(Cin, C, 1) stored as (Cin, C) for x @ W
        "wproj": w(ks[0], (Cin, C), Cin),
        "bproj": jnp.zeros((1, C), jnp.float32),
        # norm13
        "g13": jnp.ones((1, C), jnp.float32),
        "b13": jnp.zeros((1, C), jnp.float32),
        # MHA in-proj (stored transposed: x @ W)
        "wq": w(ks[1], (C, C), C), "bq": jnp.zeros((1, C), jnp.float32),
        "wk": w(ks[2], (C, C), C), "bk": jnp.zeros((1, C), jnp.float32),
        "wv": w(ks[3], (C, C), C), "bv": jnp.zeros((1, C), jnp.float32),
        # MHA out-proj
        "wo": w(ks[4], (C, C), C), "bo": jnp.zeros((1, C), jnp.float32),
        # norm12
        "g12": jnp.ones((1, C), jnp.float32),
        "b12": jnp.zeros((1, C), jnp.float32),
        # FFN
        "w11": w(ks[5], (C, F), C), "b11": jnp.zeros((1, F), jnp.float32),
        "w12": w(ks[6], (F, C), F), "b12f": jnp.zeros((1, C), jnp.float32),
    }


def pack_params(p):
    """Fuse/reshape weights for the kernel: attention scale folded into Wq/bq,
    Wk|Wv fused lane-wise, matmul weights cast to bf16 (biases and LayerNorm
    params stay f32)."""
    scale = 1.0 / math.sqrt(HEAD_DIM)
    return {
        "wproj": p["wproj"].astype(_BF16), "bproj": p["bproj"],
        "g13": p["g13"], "b13": p["b13"],
        "wq": (p["wq"] * scale).astype(_BF16), "bq": p["bq"] * scale,
        "wkv": jnp.concatenate([p["wk"], p["wv"]], axis=1).astype(_BF16),
        "bkv": jnp.concatenate([p["bk"], p["bv"]], axis=1),
        "wo": p["wo"].astype(_BF16), "bo": p["bo"],
        "g12": p["g12"], "b12": p["b12"],
        "w11": p["w11"].astype(_BF16), "b11": p["b11"],
        "w12": p["w12"].astype(_BF16), "b12f": p["b12f"],
    }


if __name__ == "__main__":
    key = jax.random.PRNGKey(0)
    k_params, k_x0, k_pts = jax.random.split(key, 3)

    B, N, K_SAMPLES = 2, 64, 16
    params = pack_params(init_params(k_params))
    x0 = jax.random.normal(k_x0, (B, D_MODEL, N), jnp.float32)   # encoded pts
    points = jax.random.normal(k_pts, (B, 3, N), jnp.float32)    # xyz coords

    fwd = jax.jit(gdp_forward, static_argnums=(3,))
    x1, pts_out = fwd(params, x0, points, K_SAMPLES)
    jax.block_until_ready((x1, pts_out))

    assert x1.shape == (B, D_MODEL + D_OUT, K_SAMPLES)
    assert pts_out.shape == (B, 3, K_SAMPLES)
    assert jnp.all(jnp.isfinite(x1)) and jnp.all(jnp.isfinite(pts_out))
    print("KERNEL_OK")
</pallas_src>

<mosaic_0001>
module attributes {stable_mosaic.version = 11 : i64} {
  func.func @_gdp_kernel(%arg0: i32, %arg1: memref<2x16xi32, #tpu.memory_space<smem>>, %arg2: memref<1x64x128xf32, #tpu.memory_space<vmem>>, %arg3: memref<128x128xbf16, #tpu.memory_space<vmem>>, %arg4: memref<1x128xf32, #tpu.memory_space<vmem>>, %arg5: memref<1x128xf32, #tpu.memory_space<vmem>>, %arg6: memref<1x128xf32, #tpu.memory_space<vmem>>, %arg7: memref<128x128xbf16, #tpu.memory_space<vmem>>, %arg8: memref<1x128xf32, #tpu.memory_space<vmem>>, %arg9: memref<128x256xbf16, #tpu.memory_space<vmem>>, %arg10: memref<1x256xf32, #tpu.memory_space<vmem>>, %arg11: memref<128x128xbf16, #tpu.memory_space<vmem>>, %arg12: memref<1x128xf32, #tpu.memory_space<vmem>>, %arg13: memref<1x128xf32, #tpu.memory_space<vmem>>, %arg14: memref<1x128xf32, #tpu.memory_space<vmem>>, %arg15: memref<128x256xbf16, #tpu.memory_space<vmem>>, %arg16: memref<1x256xf32, #tpu.memory_space<vmem>>, %arg17: memref<256x128xbf16, #tpu.memory_space<vmem>>, %arg18: memref<1x128xf32, #tpu.memory_space<vmem>>, %arg19: memref<1x16x256xf32, #tpu.memory_space<vmem>>, %arg20: memref<64x128xf32, #tpu.memory_space<vmem>>, %arg21: memref<16x128xf32, #tpu.memory_space<vmem>>, %arg22: memref<16x128xf32, #tpu.memory_space<vmem>>, %arg23: memref<64x64xf32, #tpu.memory_space<vmem>>) attributes {dimension_semantics = [#tpu.dimension_semantics<parallel>], iteration_bounds = array<i64: 2>, scalar_prefetch = 1 : i64, scratch_operands = 4 : i64, tpu.core_type = #tpu.core_type<tc>, window_params = [{transform_indices = @transform_0, window_bounds = array<i64: 1, 64, 128>}, {pipeline_mode = #tpu.pipeline_mode<synchronous>, transform_indices = @transform_1, window_bounds = array<i64: 128, 128>}, {pipeline_mode = #tpu.pipeline_mode<synchronous>, transform_indices = @transform_2, window_bounds = array<i64: 1, 128>}, {pipeline_mode = #tpu.pipeline_mode<synchronous>, transform_indices = @transform_3, window_bounds = array<i64: 1, 128>}, {pipeline_mode = #tpu.pipeline_mode<synchronous>, transform_indices = @transform_4, window_bounds = array<i64: 1, 128>}, {pipeline_mode = #tpu.pipeline_mode<synchronous>, transform_indices = @transform_5, window_bounds = array<i64: 128, 128>}, {pipeline_mode = #tpu.pipeline_mode<synchronous>, transform_indices = @transform_6, window_bounds = array<i64: 1, 128>}, {pipeline_mode = #tpu.pipeline_mode<synchronous>, transform_indices = @transform_7, window_bounds = array<i64: 128, 256>}, {pipeline_mode = #tpu.pipeline_mode<synchronous>, transform_indices = @transform_8, window_bounds = array<i64: 1, 256>}, {pipeline_mode = #tpu.pipeline_mode<synchronous>, transform_indices = @transform_9, window_bounds = array<i64: 128, 128>}, {pipeline_mode = #tpu.pipeline_mode<synchronous>, transform_indices = @transform_10, window_bounds = array<i64: 1, 128>}, {pipeline_mode = #tpu.pipeline_mode<synchronous>, transform_indices = @transform_11, window_bounds = array<i64: 1, 128>}, {pipeline_mode = #tpu.pipeline_mode<synchronous>, transform_indices = @transform_12, window_bounds = array<i64: 1, 128>}, {pipeline_mode = #tpu.pipeline_mode<synchronous>, transform_indices = @transform_13, window_bounds = array<i64: 128, 256>}, {pipeline_mode = #tpu.pipeline_mode<synchronous>, transform_indices = @transform_14, window_bounds = array<i64: 1, 256>}, {pipeline_mode = #tpu.pipeline_mode<synchronous>, transform_indices = @transform_15, window_bounds = array<i64: 256, 128>}, {pipeline_mode = #tpu.pipeline_mode<synchronous>, transform_indices = @transform_16, window_bounds = array<i64: 1, 128>}, {transform_indices = @transform_17, window_bounds = array<i64: 1, 16, 256>}]} {
    %c0 = arith.constant 0 : index
    %c0_0 = arith.constant 0 : index
    %c0_1 = arith.constant 0 : index
    %0 = vector.load %arg2[%c0, %c0_0, %c0_1] : memref<1x64x128xf32, #tpu.memory_space<vmem>>, vector<1x64x128xf32>
    %1 = vector.shape_cast %0 : vector<1x64x128xf32> to vector<64x128xf32>
    %2 = arith.truncf %1 : vector<64x128xf32> to vector<64x128xbf16>
    %c0_2 = arith.constant 0 : index
    %c0_3 = arith.constant 0 : index
    %3 = vector.load %arg3[%c0_2, %c0_3] : memref<128x128xbf16, #tpu.memory_space<vmem>>, vector<128x128xbf16>
    %cst = arith.constant dense<0.000000e+00> : vector<64x128xf32>
    %4 = tpu.matmul %2, %3, %cst {dimension_numbers = #tpu.dot_dimension_numbers<[1], [0], [0], [1], [0, 0, 1, 1], [], []>} : vector<64x128xbf16>, vector<128x128xbf16>, vector<64x128xf32> -> vector<64x128xf32>
    %c0_4 = arith.constant 0 : index
    %c0_5 = arith.constant 0 : index
    %5 = vector.load %arg4[%c0_4, %c0_5] : memref<1x128xf32, #tpu.memory_space<vmem>>, vector<1x128xf32>
    %6 = vector.broadcast %5 : vector<1x128xf32> to vector<64x128xf32>
    %7 = arith.addf %4, %6 : vector<64x128xf32>
    %c0_6 = arith.constant 0 : index
    %c0_7 = arith.constant 0 : index
    %8 = vector.load %arg5[%c0_6, %c0_7] : memref<1x128xf32, #tpu.memory_space<vmem>>, vector<1x128xf32>
    %c0_8 = arith.constant 0 : index
    %c0_9 = arith.constant 0 : index
    %9 = vector.load %arg6[%c0_8, %c0_9] : memref<1x128xf32, #tpu.memory_space<vmem>>, vector<1x128xf32>
    %cst_10 = arith.constant dense<0.000000e+00> : vector<64xf32>
    %10 = vector.multi_reduction <add>, %7, %cst_10 [1] : vector<64x128xf32> to vector<64xf32>
    %11 = vector.shape_cast %10 : vector<64xf32> to vector<64x1xf32>
    %cst_11 = arith.constant 1.280000e+02 : f32
    %12 = vector.broadcast %cst_11 : f32 to vector<64x1xf32>
    %13 = arith.divf %11, %12 : vector<64x1xf32>
    %14 = vector.broadcast %13 : vector<64x1xf32> to vector<64x128xf32>
    %15 = arith.subf %7, %14 : vector<64x128xf32>
    %16 = arith.mulf %15, %15 : vector<64x128xf32>
    %cst_12 = arith.constant dense<0.000000e+00> : vector<64xf32>
    %17 = vector.multi_reduction <add>, %16, %cst_12 [1] : vector<64x128xf32> to vector<64xf32>
    %18 = vector.shape_cast %17 : vector<64xf32> to vector<64x1xf32>
    %cst_13 = arith.constant 1.280000e+02 : f32
    %19 = vector.broadcast %cst_13 : f32 to vector<64x1xf32>
    %20 = arith.divf %18, %19 : vector<64x1xf32>
    %21 = vector.broadcast %13 : vector<64x1xf32> to vector<64x128xf32>
    %22 = arith.subf %7, %21 : vector<64x128xf32>
    %cst_14 = arith.constant 9.99999974E-6 : f32
    %23 = vector.broadcast %cst_14 : f32 to vector<64x1xf32>
    %24 = arith.addf %20, %23 : vector<64x1xf32>
    %25 = math.rsqrt %24 : vector<64x1xf32>
    %26 = vector.broadcast %25 : vector<64x1xf32> to vector<64x128xf32>
    %27 = arith.mulf %22, %26 : vector<64x128xf32>
    %28 = vector.broadcast %8 : vector<1x128xf32> to vector<64x128xf32>
    %29 = arith.mulf %27, %28 : vector<64x128xf32>
    %30 = vector.broadcast %9 : vector<1x128xf32> to vector<64x128xf32>
    %31 = arith.addf %29, %30 : vector<64x128xf32>
    %c0_15 = arith.constant 0 : index
    %c0_16 = arith.constant 0 : index
    %32 = vector.load %arg20[%c0_15, %c0_16] : memref<64x128xf32, #tpu.memory_space<vmem>>, vector<64x128xf32>
    tpu.vector_store %arg20[%c0_15, %c0_16], %31 {strides = array<i32>} : memref<64x128xf32, #tpu.memory_space<vmem>>, vector<64x128xf32>,
    %c0_i32 = arith.constant 0 : i32
    %c16_i32 = arith.constant 16 : i32
    %33 = arith.addi %c0_i32, %c16_i32 : i32
    %c1_i32 = arith.constant 1 : i32
    scf.for %arg24 = %c0_i32 to %33 step %c1_i32  : i32 {
      %c1_i32_82 = arith.constant 1 : i32
      %157 = arith.muli %arg24, %c1_i32_82 : i32
      %c0_i32_83 = arith.constant 0 : i32
      %158 = arith.addi %c0_i32_83, %157 : i32
      %159 = arith.index_cast %arg0 : i32 to index
      %160 = arith.index_cast %158 : i32 to index
      %161 = memref.load %arg1[%159, %160] : memref<2x16xi32, #tpu.memory_space<smem>>
      %c0_84 = arith.constant 0 : index
      %162 = arith.index_cast %161 : i32 to index
      %c0_85 = arith.constant 0 : index
      %163 = vector.load %arg2[%c0_84, %162, %c0_85] : memref<1x64x128xf32, #tpu.memory_space<vmem>>, vector<1x1x128xf32>
      %164 = vector.shape_cast %163 : vector<1x1x128xf32> to vector<1x128xf32>
      %165 = arith.index_cast %158 : i32 to index
      %c0_86 = arith.constant 0 : index
      %166 = vector.load %arg21[%165, %c0_86] : memref<16x128xf32, #tpu.memory_space<vmem>>, vector<1x128xf32>
      tpu.vector_store %arg21[%165, %c0_86], %164 {strides = array<i32>} : memref<16x128xf32, #tpu.memory_space<vmem>>, vector<1x128xf32>,
      %167 = arith.index_cast %161 : i32 to index
      %c0_87 = arith.constant 0 : index
      %168 = vector.load %arg20[%167, %c0_87] : memref<64x128xf32, #tpu.memory_space<vmem>>, vector<1x128xf32>
      %169 = arith.index_cast %158 : i32 to index
      %c0_88 = arith.constant 0 : index
      %170 = vector.load %arg22[%169, %c0_88] : memref<16x128xf32, #tpu.memory_space<vmem>>, vector<1x128xf32>
      tpu.vector_store %arg22[%169, %c0_88], %168 {strides = array<i32>} : memref<16x128xf32, #tpu.memory_space<vmem>>, vector<1x128xf32>,
    }
    %c16_i32_17 = arith.constant 16 : i32
    %c0_18 = arith.constant 0 : index
    %c0_19 = arith.constant 0 : index
    %34 = vector.load %arg21[%c0_18, %c0_19] : memref<16x128xf32, #tpu.memory_space<vmem>>, vector<16x128xf32>
    %c0_20 = arith.constant 0 : index
    %c0_21 = arith.constant 0 : index
    %c0_22 = arith.constant 0 : index
    %35 = vector.load %arg19[%c0_20, %c0_21, %c0_22] : memref<1x16x256xf32, #tpu.memory_space<vmem>>, vector<1x16x128xf32>
    %36 = vector.shape_cast %35 : vector<1x16x128xf32> to vector<16x128xf32>
    %37 = vector.shape_cast %34 : vector<16x128xf32> to vector<1x16x128xf32>
    tpu.vector_store %arg19[%c0_20, %c0_21, %c0_22], %37 {strides = array<i32>} : memref<1x16x256xf32, #tpu.memory_space<vmem>>, vector<1x16x128xf32>,
    %c0_23 = arith.constant 0 : index
    %c0_24 = arith.constant 0 : index
    %38 = vector.load %arg22[%c0_23, %c0_24] : memref<16x128xf32, #tpu.memory_space<vmem>>, vector<16x128xf32>
    %39 = arith.truncf %38 : vector<16x128xf32> to vector<16x128xbf16>
    %c0_25 = arith.constant 0 : index
    %c0_26 = arith.constant 0 : index
    %40 = vector.load %arg7[%c0_25, %c0_26] : memref<128x128xbf16, #tpu.memory_space<vmem>>, vector<128x128xbf16>
    %cst_27 = arith.constant dense<0.000000e+00> : vector<16x128xf32>
    %41 = tpu.matmul %39, %40, %cst_27 {dimension_numbers = #tpu.dot_dimension_numbers<[1], [0], [0], [1], [0, 0, 1, 1], [], []>} : vector<16x128xbf16>, vector<128x128xbf16>, vector<16x128xf32> -> vector<16x128xf32>
    %c0_28 = arith.constant 0 : index
    %c0_29 = arith.constant 0 : index
    %42 = vector.load %arg8[%c0_28, %c0_29] : memref<1x128xf32, #tpu.memory_space<vmem>>, vector<1x128xf32>
    %43 = vector.broadcast %42 : vector<1x128xf32> to vector<16x128xf32>
    %44 = arith.addf %41, %43 : vector<16x128xf32>
    %45 = arith.truncf %44 : vector<16x128xf32> to vector<16x128xbf16>
    %46 = arith.truncf %31 : vector<64x128xf32> to vector<64x128xbf16>
    %c0_30 = arith.constant 0 : index
    %c0_31 = arith.constant 0 : index
    %47 = vector.load %arg9[%c0_30, %c0_31] : memref<128x256xbf16, #tpu.memory_space<vmem>>, vector<128x256xbf16>
    %cst_32 = arith.constant dense<0.000000e+00> : vector<64x256xf32>
    %48 = tpu.matmul %46, %47, %cst_32 {dimension_numbers = #tpu.dot_dimension_numbers<[1], [0], [0], [1], [0, 0, 1, 1], [], []>} : vector<64x128xbf16>, vector<128x256xbf16>, vector<64x256xf32> -> vector<64x256xf32>
    %c0_33 = arith.constant 0 : index
    %c0_34 = arith.constant 0 : index
    %49 = vector.load %arg10[%c0_33, %c0_34] : memref<1x256xf32, #tpu.memory_space<vmem>>, vector<1x256xf32>
    %50 = vector.broadcast %49 : vector<1x256xf32> to vector<64x256xf32>
    %51 = arith.addf %48, %50 : vector<64x256xf32>
    %52 = vector.extract_strided_slice %51 {offsets = [0, 0], sizes = [64, 128], strides = [1, 1]} : vector<64x256xf32> to vector<64x128xf32>
    %53 = arith.truncf %52 : vector<64x128xf32> to vector<64x128xbf16>
    %54 = vector.extract_strided_slice %51 {offsets = [0, 128], sizes = [64, 128], strides = [1, 1]} : vector<64x256xf32> to vector<64x128xf32>
    %55 = arith.truncf %54 : vector<64x128xf32> to vector<64x128xbf16>
    %56 = vector.extract_strided_slice %45 {offsets = [0, 0], sizes = [16, 32], strides = [1, 1]} : vector<16x128xbf16> to vector<16x32xbf16>
    %57 = vector.extract_strided_slice %53 {offsets = [0, 0], sizes = [64, 32], strides = [1, 1]} : vector<64x128xbf16> to vector<64x32xbf16>
    %cst_35 = arith.constant dense<0.000000e+00> : vector<16x64xf32>
    %58 = tpu.matmul %56, %57, %cst_35 {dimension_numbers = #tpu.dot_dimension_numbers<[1], [1], [0], [0], [0, 0, 1, 0], [], []>} : vector<16x32xbf16>, vector<64x32xbf16>, vector<16x64xf32> -> vector<16x64xf32>
    %c0_36 = arith.constant 0 : index
    %c0_37 = arith.constant 0 : index
    %59 = vector.load %arg23[%c0_36, %c0_37] : memref<64x64xf32, #tpu.memory_space<vmem>>, vector<16x64xf32>
    tpu.vector_store %arg23[%c0_36, %c0_37], %58 {strides = array<i32>} : memref<64x64xf32, #tpu.memory_space<vmem>>, vector<16x64xf32>,
    %60 = vector.extract_strided_slice %45 {offsets = [0, 32], sizes = [16, 32], strides = [1, 1]} : vector<16x128xbf16> to vector<16x32xbf16>
    %61 = vector.extract_strided_slice %53 {offsets = [0, 32], sizes = [64, 32], strides = [1, 1]} : vector<64x128xbf16> to vector<64x32xbf16>
    %cst_38 = arith.constant dense<0.000000e+00> : vector<16x64xf32>
    %62 = tpu.matmul %60, %61, %cst_38 {dimension_numbers = #tpu.dot_dimension_numbers<[1], [1], [0], [0], [0, 0, 1, 0], [], []>} : vector<16x32xbf16>, vector<64x32xbf16>, vector<16x64xf32> -> vector<16x64xf32>
    %c16 = arith.constant 16 : index
    %c0_39 = arith.constant 0 : index
    %63 = vector.load %arg23[%c16, %c0_39] : memref<64x64xf32, #tpu.memory_space<vmem>>, vector<16x64xf32>
    tpu.vector_store %arg23[%c16, %c0_39], %62 {strides = array<i32>} : memref<64x64xf32, #tpu.memory_space<vmem>>, vector<16x64xf32>,
    %64 = vector.extract_strided_slice %45 {offsets = [0, 64], sizes = [16, 32], strides = [1, 1]} : vector<16x128xbf16> to vector<16x32xbf16>
    %65 = vector.extract_strided_slice %53 {offsets = [0, 64], sizes = [64, 32], strides = [1, 1]} : vector<64x128xbf16> to vector<64x32xbf16>
    %cst_40 = arith.constant dense<0.000000e+00> : vector<16x64xf32>
    %66 = tpu.matmul %64, %65, %cst_40 {dimension_numbers = #tpu.dot_dimension_numbers<[1], [1], [0], [0], [0, 0, 1, 0], [], []>} : vector<16x32xbf16>, vector<64x32xbf16>, vector<16x64xf32> -> vector<16x64xf32>
    %c32 = arith.constant 32 : index
    %c0_41 = arith.constant 0 : index
    %67 = vector.load %arg23[%c32, %c0_41] : memref<64x64xf32, #tpu.memory_space<vmem>>, vector<16x64xf32>
    tpu.vector_store %arg23[%c32, %c0_41], %66 {strides = array<i32>} : memref<64x64xf32, #tpu.memory_space<vmem>>, vector<16x64xf32>,
    %68 = vector.extract_strided_slice %45 {offsets = [0, 96], sizes = [16, 32], strides = [1, 1]} : vector<16x128xbf16> to vector<16x32xbf16>
    %69 = vector.extract_strided_slice %53 {offsets = [0, 96], sizes = [64, 32], strides = [1, 1]} : vector<64x128xbf16> to vector<64x32xbf16>
    %cst_42 = arith.constant dense<0.000000e+00> : vector<16x64xf32>
    %70 = tpu.matmul %68, %69, %cst_42 {dimension_numbers = #tpu.dot_dimension_numbers<[1], [1], [0], [0], [0, 0, 1, 0], [], []>} : vector<16x32xbf16>, vector<64x32xbf16>, vector<16x64xf32> -> vector<16x64xf32>
    %c48 = arith.constant 48 : index
    %c0_43 = arith.constant 0 : index
    %71 = vector.load %arg23[%c48, %c0_43] : memref<64x64xf32, #tpu.memory_space<vmem>>, vector<16x64xf32>
    tpu.vector_store %arg23[%c48, %c0_43], %70 {strides = array<i32>} : memref<64x64xf32, #tpu.memory_space<vmem>>, vector<16x64xf32>,
    %c0_44 = arith.constant 0 : index
    %c0_45 = arith.constant 0 : index
    %72 = vector.load %arg23[%c0_44, %c0_45] : memref<64x64xf32, #tpu.memory_space<vmem>>, vector<64x64xf32>
    %cst_46 = arith.constant dense<0xFF800000> : vector<64xf32>
    %73 = vector.multi_reduction <maximumf>, %72, %cst_46 [1] : vector<64x64xf32> to vector<64xf32>
    %74 = vector.shape_cast %73 : vector<64xf32> to vector<64x1xf32>
    %75 = vector.broadcast %74 : vector<64x1xf32> to vector<64x64xf32>
    %76 = arith.subf %72, %75 : vector<64x64xf32>
    %77 = math.exp %76 : vector<64x64xf32>
    %cst_47 = arith.constant dense<0.000000e+00> : vector<64xf32>
    %78 = vector.multi_reduction <add>, %77, %cst_47 [1] : vector<64x64xf32> to vector<64xf32>
    %79 = vector.shape_cast %78 : vector<64xf32> to vector<64x1xf32>
    %80 = tpu.reciprocal %79 : vector<64x1xf32> -> vector<64x1xf32>
    %81 = vector.broadcast %80 : vector<64x1xf32> to vector<64x64xf32>
    %82 = arith.mulf %77, %81 : vector<64x64xf32>
    %83 = arith.truncf %82 : vector<64x64xf32> to vector<64x64xbf16>
    %84 = vector.extract_strided_slice %83 {offsets = [0, 0], sizes = [16, 64], strides = [1, 1]} : vector<64x64xbf16> to vector<16x64xbf16>
    %85 = vector.extract_strided_slice %55 {offsets = [0, 0], sizes = [64, 32], strides = [1, 1]} : vector<64x128xbf16> to vector<64x32xbf16>
    %cst_48 = arith.constant dense<0.000000e+00> : vector<16x32xf32>
    %86 = tpu.matmul %84, %85, %cst_48 {dimension_numbers = #tpu.dot_dimension_numbers<[1], [0], [0], [1], [0, 0, 1, 1], [], []>} : vector<16x64xbf16>, vector<64x32xbf16>, vector<16x32xf32> -> vector<16x32xf32>
    %87 = vector.extract_strided_slice %83 {offsets = [16, 0], sizes = [16, 64], strides = [1, 1]} : vector<64x64xbf16> to vector<16x64xbf16>
    %88 = vector.extract_strided_slice %55 {offsets = [0, 32], sizes = [64, 32], strides = [1, 1]} : vector<64x128xbf16> to vector<64x32xbf16>
    %cst_49 = arith.constant dense<0.000000e+00> : vector<16x32xf32>
    %89 = tpu.matmul %87, %88, %cst_49 {dimension_numbers = #tpu.dot_dimension_numbers<[1], [0], [0], [1], [0, 0, 1, 1], [], []>} : vector<16x64xbf16>, vector<64x32xbf16>, vector<16x32xf32> -> vector<16x32xf32>
    %90 = vector.extract_strided_slice %83 {offsets = [32, 0], sizes = [16, 64], strides = [1, 1]} : vector<64x64xbf16> to vector<16x64xbf16>
    %91 = vector.extract_strided_slice %55 {offsets = [0, 64], sizes = [64, 32], strides = [1, 1]} : vector<64x128xbf16> to vector<64x32xbf16>
    %cst_50 = arith.constant dense<0.000000e+00> : vector<16x32xf32>
    %92 = tpu.matmul %90, %91, %cst_50 {dimension_numbers = #tpu.dot_dimension_numbers<[1], [0], [0], [1], [0, 0, 1, 1], [], []>} : vector<16x64xbf16>, vector<64x32xbf16>, vector<16x32xf32> -> vector<16x32xf32>
    %93 = vector.extract_strided_slice %83 {offsets = [48, 0], sizes = [16, 64], strides = [1, 1]} : vector<64x64xbf16> to vector<16x64xbf16>
    %94 = vector.extract_strided_slice %55 {offsets = [0, 96], sizes = [64, 32], strides = [1, 1]} : vector<64x128xbf16> to vector<64x32xbf16>
    %cst_51 = arith.constant dense<0.000000e+00> : vector<16x32xf32>
    %95 = tpu.matmul %93, %94, %cst_51 {dimension_numbers = #tpu.dot_dimension_numbers<[1], [0], [0], [1], [0, 0, 1, 1], [], []>} : vector<16x64xbf16>, vector<64x32xbf16>, vector<16x32xf32> -> vector<16x32xf32>
    %96 = tpu.concatenate %86, %89, %92, %95 in 1 : vector<16x32xf32>, vector<16x32xf32>, vector<16x32xf32>, vector<16x32xf32> -> vector<16x128xf32>
    %97 = arith.truncf %96 : vector<16x128xf32> to vector<16x128xbf16>
    %c0_52 = arith.constant 0 : index
    %c0_53 = arith.constant 0 : index
    %98 = vector.load %arg11[%c0_52, %c0_53] : memref<128x128xbf16, #tpu.memory_space<vmem>>, vector<128x128xbf16>
    %cst_54 = arith.constant dense<0.000000e+00> : vector<16x128xf32>
    %99 = tpu.matmul %97, %98, %cst_54 {dimension_numbers = #tpu.dot_dimension_numbers<[1], [0], [0], [1], [0, 0, 1, 1], [], []>} : vector<16x128xbf16>, vector<128x128xbf16>, vector<16x128xf32> -> vector<16x128xf32>
    %c0_55 = arith.constant 0 : index
    %c0_56 = arith.constant 0 : index
    %100 = vector.load %arg12[%c0_55, %c0_56] : memref<1x128xf32, #tpu.memory_space<vmem>>, vector<1x128xf32>
    %101 = vector.broadcast %100 : vector<1x128xf32> to vector<16x128xf32>
    %102 = arith.addf %99, %101 : vector<16x128xf32>
    %103 = arith.addf %38, %102 : vector<16x128xf32>
    %c0_57 = arith.constant 0 : index
    %c0_58 = arith.constant 0 : index
    %104 = vector.load %arg13[%c0_57, %c0_58] : memref<1x128xf32, #tpu.memory_space<vmem>>, vector<1x128xf32>
    %c0_59 = arith.constant 0 : index
    %c0_60 = arith.constant 0 : index
    %105 = vector.load %arg14[%c0_59, %c0_60] : memref<1x128xf32, #tpu.memory_space<vmem>>, vector<1x128xf32>
    %cst_61 = arith.constant dense<0.000000e+00> : vector<16xf32>
    %106 = vector.multi_reduction <add>, %103, %cst_61 [1] : vector<16x128xf32> to vector<16xf32>
    %107 = vector.shape_cast %106 : vector<16xf32> to vector<16x1xf32>
    %cst_62 = arith.constant 1.280000e+02 : f32
    %108 = vector.broadcast %cst_62 : f32 to vector<16x1xf32>
    %109 = arith.divf %107, %108 : vector<16x1xf32>
    %110 = vector.broadcast %109 : vector<16x1xf32> to vector<16x128xf32>
    %111 = arith.subf %103, %110 : vector<16x128xf32>
    %112 = arith.mulf %111, %111 : vector<16x128xf32>
    %cst_63 = arith.constant dense<0.000000e+00> : vector<16xf32>
    %113 = vector.multi_reduction <add>, %112, %cst_63 [1] : vector<16x128xf32> to vector<16xf32>
    %114 = vector.shape_cast %113 : vector<16xf32> to vector<16x1xf32>
    %cst_64 = arith.constant 1.280000e+02 : f32
    %115 = vector.broadcast %cst_64 : f32 to vector<16x1xf32>
    %116 = arith.divf %114, %115 : vector<16x1xf32>
    %117 = vector.broadcast %109 : vector<16x1xf32> to vector<16x128xf32>
    %118 = arith.subf %103, %117 : vector<16x128xf32>
    %cst_65 = arith.constant 9.99999974E-6 : f32
    %119 = vector.broadcast %cst_65 : f32 to vector<16x1xf32>
    %120 = arith.addf %116, %119 : vector<16x1xf32>
    %121 = math.rsqrt %120 : vector<16x1xf32>
    %122 = vector.broadcast %121 : vector<16x1xf32> to vector<16x128xf32>
    %123 = arith.mulf %118, %122 : vector<16x128xf32>
    %124 = vector.broadcast %104 : vector<1x128xf32> to vector<16x128xf32>
    %125 = arith.mulf %123, %124 : vector<16x128xf32>
    %126 = vector.broadcast %105 : vector<1x128xf32> to vector<16x128xf32>
    %127 = arith.addf %125, %126 : vector<16x128xf32>
    %128 = arith.truncf %127 : vector<16x128xf32> to vector<16x128xbf16>
    %c0_66 = arith.constant 0 : index
    %c0_67 = arith.constant 0 : index
    %129 = vector.load %arg15[%c0_66, %c0_67] : memref<128x256xbf16, #tpu.memory_space<vmem>>, vector<128x256xbf16>
    %cst_68 = arith.constant dense<0.000000e+00> : vector<16x256xf32>
    %130 = tpu.matmul %128, %129, %cst_68 {dimension_numbers = #tpu.dot_dimension_numbers<[1], [0], [0], [1], [0, 0, 1, 1], [], []>} : vector<16x128xbf16>, vector<128x256xbf16>, vector<16x256xf32> -> vector<16x256xf32>
    %c0_69 = arith.constant 0 : index
    %c0_70 = arith.constant 0 : index
    %131 = vector.load %arg16[%c0_69, %c0_70] : memref<1x256xf32, #tpu.memory_space<vmem>>, vector<1x256xf32>
    %132 = vector.broadcast %131 : vector<1x256xf32> to vector<16x256xf32>
    %133 = arith.addf %130, %132 : vector<16x256xf32>
    %134 = arith.mulf %133, %133 : vector<16x256xf32>
    %135 = arith.mulf %133, %134 : vector<16x256xf32>
    %cst_71 = arith.constant 4.471500e-02 : f32
    %136 = vector.broadcast %cst_71 : f32 to vector<16x256xf32>
    %137 = arith.mulf %136, %135 : vector<16x256xf32>
    %138 = arith.addf %133, %137 : vector<16x256xf32>
    %cst_72 = arith.constant 0.797884583 : f32
    %139 = vector.broadcast %cst_72 : f32 to vector<16x256xf32>
    %140 = arith.mulf %139, %138 : vector<16x256xf32>
    %141 = math.tanh %140 : vector<16x256xf32>
    %cst_73 = arith.constant 1.000000e+00 : f32
    %142 = vector.broadcast %cst_73 : f32 to vector<16x256xf32>
    %143 = arith.addf %142, %141 : vector<16x256xf32>
    %cst_74 = arith.constant 5.000000e-01 : f32
    %144 = vector.broadcast %cst_74 : f32 to vector<16x256xf32>
    %145 = arith.mulf %144, %143 : vector<16x256xf32>
    %146 = arith.mulf %133, %145 : vector<16x256xf32>
    %147 = arith.truncf %146 : vector<16x256xf32> to vector<16x256xbf16>
    %c0_75 = arith.constant 0 : index
    %c0_76 = arith.constant 0 : index
    %148 = vector.load %arg17[%c0_75, %c0_76] : memref<256x128xbf16, #tpu.memory_space<vmem>>, vector<256x128xbf16>
    %cst_77 = arith.constant dense<0.000000e+00> : vector<16x128xf32>
    %149 = tpu.matmul %147, %148, %cst_77 {dimension_numbers = #tpu.dot_dimension_numbers<[1], [0], [0], [1], [0, 0, 1, 1], [], []>} : vector<16x256xbf16>, vector<256x128xbf16>, vector<16x128xf32> -> vector<16x128xf32>
    %c0_78 = arith.constant 0 : index
    %c0_79 = arith.constant 0 : index
    %150 = vector.load %arg18[%c0_78, %c0_79] : memref<1x128xf32, #tpu.memory_space<vmem>>, vector<1x128xf32>
    %151 = vector.broadcast %150 : vector<1x128xf32> to vector<16x128xf32>
    %152 = arith.addf %149, %151 : vector<16x128xf32>
    %153 = arith.addf %127, %152 : vector<16x128xf32>
    %c0_80 = arith.constant 0 : index
    %c0_81 = arith.constant 0 : index
    %c128 = arith.constant 128 : index
    %154 = vector.load %arg19[%c0_80, %c0_81, %c128] : memref<1x16x256xf32, #tpu.memory_space<vmem>>, vector<1x16x128xf32>
    %155 = vector.shape_cast %154 : vector<1x16x128xf32> to vector<16x128xf32>
    %156 = vector.shape_cast %153 : vector<16x128xf32> to vector<1x16x128xf32>
    tpu.vector_store %arg19[%c0_80, %c0_81, %c128], %156 {strides = array<i32>} : memref<1x16x256xf32, #tpu.memory_space<vmem>>, vector<1x16x128xf32>,
    return
  }
  func.func @transform_0(%arg0: i32, %arg1: memref<2x16xi32, #tpu.memory_space<smem>>) -> (i32, i32, i32) {
    %c0_i32 = arith.constant 0 : i32
    %c0_i32_0 = arith.constant 0 : i32
    %c0_i32_1 = arith.constant 0 : i32
    return %arg0, %c0_i32, %c0_i32_0 : i32, i32, i32
  }
  func.func @transform_1(%arg0: i32, %arg1: memref<2x16xi32, #tpu.memory_space<smem>>) -> (i32, i32) {
    %c0_i32 = arith.constant 0 : i32
    %c0_i32_0 = arith.constant 0 : i32
    %c0_i32_1 = arith.constant 0 : i32
    return %c0_i32, %c0_i32_0 : i32, i32
  }
  func.func @transform_2(%arg0: i32, %arg1: memref<2x16xi32, #tpu.memory_space<smem>>) -> (i32, i32) {
    %c0_i32 = arith.constant 0 : i32
    %c0_i32_0 = arith.constant 0 : i32
    %c0_i32_1 = arith.constant 0 : i32
    return %c0_i32, %c0_i32_0 : i32, i32
  }
  func.func @transform_3(%arg0: i32, %arg1: memref<2x16xi32, #tpu.memory_space<smem>>) -> (i32, i32) {
    %c0_i32 = arith.constant 0 : i32
    %c0_i32_0 = arith.constant 0 : i32
    %c0_i32_1 = arith.constant 0 : i32
    return %c0_i32, %c0_i32_0 : i32, i32
  }
  func.func @transform_4(%arg0: i32, %arg1: memref<2x16xi32, #tpu.memory_space<smem>>) -> (i32, i32) {
    %c0_i32 = arith.constant 0 : i32
    %c0_i32_0 = arith.constant 0 : i32
    %c0_i32_1 = arith.constant 0 : i32
    return %c0_i32, %c0_i32_0 : i32, i32
  }
  func.func @transform_5(%arg0: i32, %arg1: memref<2x16xi32, #tpu.memory_space<smem>>) -> (i32, i32) {
    %c0_i32 = arith.constant 0 : i32
    %c0_i32_0 = arith.constant 0 : i32
    %c0_i32_1 = arith.constant 0 : i32
    return %c0_i32, %c0_i32_0 : i32, i32
  }
  func.func @transform_6(%arg0: i32, %arg1: memref<2x16xi32, #tpu.memory_space<smem>>) -> (i32, i32) {
    %c0_i32 = arith.constant 0 : i32
    %c0_i32_0 = arith.constant 0 : i32
    %c0_i32_1 = arith.constant 0 : i32
    return %c0_i32, %c0_i32_0 : i32, i32
  }
  func.func @transform_7(%arg0: i32, %arg1: memref<2x16xi32, #tpu.memory_space<smem>>) -> (i32, i32) {
    %c0_i32 = arith.constant 0 : i32
    %c0_i32_0 = arith.constant 0 : i32
    %c0_i32_1 = arith.constant 0 : i32
    return %c0_i32, %c0_i32_0 : i32, i32
  }
  func.func @transform_8(%arg0: i32, %arg1: memref<2x16xi32, #tpu.memory_space<smem>>) -> (i32, i32) {
    %c0_i32 = arith.constant 0 : i32
    %c0_i32_0 = arith.constant 0 : i32
    %c0_i32_1 = arith.constant 0 : i32
    return %c0_i32, %c0_i32_0 : i32, i32
  }
  func.func @transform_9(%arg0: i32, %arg1: memref<2x16xi32, #tpu.memory_space<smem>>) -> (i32, i32) {
    %c0_i32 = arith.constant 0 : i32
    %c0_i32_0 = arith.constant 0 : i32
    %c0_i32_1 = arith.constant 0 : i32
    return %c0_i32, %c0_i32_0 : i32, i32
  }
  func.func @transform_10(%arg0: i32, %arg1: memref<2x16xi32, #tpu.memory_space<smem>>) -> (i32, i32) {
    %c0_i32 = arith.constant 0 : i32
    %c0_i32_0 = arith.constant 0 : i32
    %c0_i32_1 = arith.constant 0 : i32
    return %c0_i32, %c0_i32_0 : i32, i32
  }
  func.func @transform_11(%arg0: i32, %arg1: memref<2x16xi32, #tpu.memory_space<smem>>) -> (i32, i32) {
    %c0_i32 = arith.constant 0 : i32
    %c0_i32_0 = arith.constant 0 : i32
    %c0_i32_1 = arith.constant 0 : i32
    return %c0_i32, %c0_i32_0 : i32, i32
  }
  func.func @transform_12(%arg0: i32, %arg1: memref<2x16xi32, #tpu.memory_space<smem>>) -> (i32, i32) {
    %c0_i32 = arith.constant 0 : i32
    %c0_i32_0 = arith.constant 0 : i32
    %c0_i32_1 = arith.constant 0 : i32
    return %c0_i32, %c0_i32_0 : i32, i32
  }
  func.func @transform_13(%arg0: i32, %arg1: memref<2x16xi32, #tpu.memory_space<smem>>) -> (i32, i32) {
    %c0_i32 = arith.constant 0 : i32
    %c0_i32_0 = arith.constant 0 : i32
    %c0_i32_1 = arith.constant 0 : i32
    return %c0_i32, %c0_i32_0 : i32, i32
  }
  func.func @transform_14(%arg0: i32, %arg1: memref<2x16xi32, #tpu.memory_space<smem>>) -> (i32, i32) {
    %c0_i32 = arith.constant 0 : i32
    %c0_i32_0 = arith.constant 0 : i32
    %c0_i32_1 = arith.constant 0 : i32
    return %c0_i32, %c0_i32_0 : i32, i32
  }
  func.func @transform_15(%arg0: i32, %arg1: memref<2x16xi32, #tpu.memory_space<smem>>) -> (i32, i32) {
    %c0_i32 = arith.constant 0 : i32
    %c0_i32_0 = arith.constant 0 : i32
    %c0_i32_1 = arith.constant 0 : i32
    return %c0_i32, %c0_i32_0 : i32, i32
  }
  func.func @transform_16(%arg0: i32, %arg1: memref<2x16xi32, #tpu.memory_space<smem>>) -> (i32, i32) {
    %c0_i32 = arith.constant 0 : i32
    %c0_i32_0 = arith.constant 0 : i32
    %c0_i32_1 = arith.constant 0 : i32
    return %c0_i32, %c0_i32_0 : i32, i32
  }
  func.func @transform_17(%arg0: i32, %arg1: memref<2x16xi32, #tpu.memory_space<smem>>) -> (i32, i32, i32) {
    %c0_i32 = arith.constant 0 : i32
    %c0_i32_0 = arith.constant 0 : i32
    %c0_i32_1 = arith.constant 0 : i32
    return %arg0, %c0_i32, %c0_i32_0 : i32, i32, i32
  }
}

</mosaic_0001>

<llo_original>
// kernel: custom-call.4
$region0: #{custom-call.4}
  %s0 = inlined_call_operand.vmem [shape: f32[2,64], index: 0, kind: output, shape index: {}]

// kernel: gdp_forward.1
$region0: #{gdp_forward.1}
  #allocation0 [shape = 'u32[]', space=smem, size = 0x4, offset = 0x4, fixed_abs, tag = 'smem constant byte address 0x4 - core index']
  #allocation1 [shape = 'u32[72,128]{1,0:T(1,128)}', space=vmem, size = 0x9000, scoped, tag = 'internal scratch']
  #allocation2 [shape = 'f32[64,128]{1,0:T(8,128)}', space=vmem, size = 0x8000, scoped, tag = 'scratch operand']
  #allocation3 [shape = 'f32[16,128]{1,0:T(8,128)}', space=vmem, size = 0x2000, scoped, tag = 'scratch operand']
  #allocation4 [shape = 'f32[16,128]{1,0:T(8,128)}', space=vmem, size = 0x2000, scoped, tag = 'scratch operand']
  #allocation5 [shape = 'f32[64,64]{1,0:T(8,128)}', space=vmem, size = 0x8000, scoped, tag = 'scratch operand']
  #allocation6 [shape = 's32[1]{0}', space=sflag, size = 0x4, scoped, tag = 'scoped memory for gdp_forward.1']
  #allocation7 [shape = 'u8[1024]{0}', space=smem, size = 0x400, scoped, tag = 'prefetched SMEM operand 0']
  %s0 = inlined_call_operand.vmem [shape: s32[2,16], index: 0, kind: input, shape index: {}]
  %s1 = inlined_call_operand.vmem [shape: f32[2,64,128], index: 1, kind: input, shape index: {}]
  %s2 = inlined_call_operand.vmem [shape: bf16[128,128], index: 2, kind: input, shape index: {}]
  %s3 = inlined_call_operand.vmem [shape: f32[1,128], index: 3, kind: input, shape index: {}]
  %s4 = inlined_call_operand.vmem [shape: f32[1,128], index: 4, kind: input, shape index: {}]
  %s5 = inlined_call_operand.vmem [shape: f32[1,128], index: 5, kind: input, shape index: {}]
  %s6 = inlined_call_operand.vmem [shape: bf16[128,128], index: 6, kind: input, shape index: {}]
  %s7 = inlined_call_operand.vmem [shape: f32[1,128], index: 7, kind: input, shape index: {}]
  %s8 = inlined_call_operand.vmem [shape: bf16[128,256], index: 8, kind: input, shape index: {}]
  %s9 = inlined_call_operand.vmem [shape: f32[1,256], index: 9, kind: input, shape index: {}]
  %s10 = inlined_call_operand.vmem [shape: bf16[128,128], index: 10, kind: input, shape index: {}]
  %s11 = inlined_call_operand.vmem [shape: f32[1,128], index: 11, kind: input, shape index: {}]
  %s12 = inlined_call_operand.vmem [shape: f32[1,128], index: 12, kind: input, shape index: {}]
  %s13 = inlined_call_operand.vmem [shape: f32[1,128], index: 13, kind: input, shape index: {}]
  %s14 = inlined_call_operand.vmem [shape: bf16[128,256], index: 14, kind: input, shape index: {}]
  %s15 = inlined_call_operand.vmem [shape: f32[1,256], index: 15, kind: input, shape index: {}]
  %s16 = inlined_call_operand.vmem [shape: bf16[256,128], index: 16, kind: input, shape index: {}]
  %s17 = inlined_call_operand.vmem [shape: f32[1,128], index: 17, kind: input, shape index: {}]
  %s18 = inlined_call_operand.hbm [shape: f32[2,16,256], index: 18, kind: output, shape index: {}]
  %s19 = sld [smem:[#allocation0]]
  $region108: #{gdp_forward.1} parent=0
    _
  %s21 = ssub.s32 1, %s19
  %s22 = scalar_select 0, %s21, %s19
  %s24 = sshll.u32 %s0, 4
  %s25 = int_to_ptr.vmem [resolvable:$true] %s24
  %27 = dma.vmem_to_smem %s25, 32, [#allocation7], [#allocation6]
  %29 = dma.done [#allocation6], 32
  %30 = sfence
  $region1: #{gdp_forward.1} parent=0
    #allocation8 [shape = 'u8[32768]{0}', space=vmem, size = 0x8000, scoped, tag = 'output window, operand 0']
    #allocation9 [shape = 's32[2]{0}', space=sflag, size = 0x8, scoped, tag = 'scoped memory for gdp_forward.1']
    %31 = vsyncpa [#allocation9], 0
    %s32 = scalar_lea.sflag [#allocation9], 1
    %33 = vsyncpa %s32, 0
    loop: start=0, step=1, limit=4
    $region2: #{gdp_forward.1} parent=1 // loop_pre_header
      _
    $region3: #{gdp_forward.1} parent=1 // loop_header
      %s35 = sphi 0, %s39
      %p36 = scmp.ge.s32.totalorder %s35, 4
      %s45 = sphi 0, %s47
      %s48 = sphi 0, %s45
      %s49 = sphi 0, %s48
      %s65 = sphi 0, %s49
      %s69 = sphi 0, %s69
      %s71 = sphi 0, %s69
      %s72 = sphi 0, %s71
      %s86 = sphi 0, %s72
      %s90 = sphi 0, %s90
      %s92 = sphi 0, %s90
      %s93 = sphi 0, %s92
      %s107 = sphi 0, %s93
      %s111 = sphi 0, %s111
      %s113 = sphi 0, %s111
      %s114 = sphi 0, %s113
      %s128 = sphi 0, %s114
      %s132 = sphi 0, %s132
      %s134 = sphi 0, %s132
      %s135 = sphi 0, %s134
      %s149 = sphi 0, %s135
      %s153 = sphi 0, %s153
      %s155 = sphi 0, %s153
      %s156 = sphi 0, %s155
      %s170 = sphi 0, %s156
      %s174 = sphi 0, %s174
      %s176 = sphi 0, %s174
      %s177 = sphi 0, %s176
      %s191 = sphi 0, %s177
      %s195 = sphi 0, %s195
      %s197 = sphi 0, %s195
      %s198 = sphi 0, %s197
      %s212 = sphi 0, %s198
      %s216 = sphi 0, %s216
      %s218 = sphi 0, %s216
      %s219 = sphi 0, %s218
      %s233 = sphi 0, %s219
      %s237 = sphi 0, %s237
      %s239 = sphi 0, %s237
      %s240 = sphi 0, %s239
      %s254 = sphi 0, %s240
      %s258 = sphi 0, %s258
      %s260 = sphi 0, %s258
      %s261 = sphi 0, %s260
      %s275 = sphi 0, %s261
      %s279 = sphi 0, %s279
      %s281 = sphi 0, %s279
      %s282 = sphi 0, %s281
      %s296 = sphi 0, %s282
      %s300 = sphi 0, %s300
      %s302 = sphi 0, %s300
      %s303 = sphi 0, %s302
      %s317 = sphi 0, %s303
      %s321 = sphi 0, %s321
      %s323 = sphi 0, %s321
      %s324 = sphi 0, %s323
      %s338 = sphi 0, %s324
      %s342 = sphi 0, %s342
      %s344 = sphi 0, %s342
      %s345 = sphi 0, %s344
      %s359 = sphi 0, %s345
      %s363 = sphi 0, %s363
      %s365 = sphi 0, %s363
      %s366 = sphi 0, %s365
      %s380 = sphi 0, %s366
      %s384 = sphi 0, %s384
      %s386 = sphi 0, %s384
      %s387 = sphi 0, %s386
      %s401 = sphi 0, %s387
      %s407 = sphi 0, %s409
      %s410 = sphi 0, %s407
      %s411 = sphi 0, %s410
      %s427 = sphi 0, %s411
    $region4: #{gdp_forward.1} parent=1 // loop_header_branch
      %38 = sbr.rel (%p36) target = $region8
    $region5: #{gdp_forward.1} parent=1 // loop_body
      %s40 = ssub.s32 %s35, 1
      %s41 = ssub.s32 %s35, 2
      %s42 = sadd.s32 %s35, 1
      %s43 = ssub.s32 %s35, %s42
      %p44 = scmp.eq.s32.totalorder %s43, 0
      %s46 = sadd.s32 %s45, 1
      %s47 = scalar_select %p44, %s45, %s46
      %p50 = pneg %p44
      %p51 = scmp.eq.s32.totalorder %s35, 1
      %p52 = por %p50, %p51
      %p53 = scmp.ne.s32.totalorder %s45, %s48
      %p54 = scmp.eq.s32.totalorder %s35, 0
      %p55 = por %p53, %p54
      %p56 = scmp.ne.s32.totalorder %s45, %s48
      %p57 = scmp.eq.s32.totalorder %s40, 1
      %p58 = por %p56, %p57
      %p59 = scmp.ne.s32.totalorder %s48, %s49
      %p60 = scmp.eq.s32.totalorder %s40, 0
      %p61 = por %p59, %p60
      %p62 = scmp.ne.s32.totalorder %s48, %s49
      %p63 = scmp.eq.s32.totalorder %s41, 1
      %p64 = por %p62, %p63
      %p66 = scmp.ne.s32.totalorder %s49, %s65
      %p67 = scmp.eq.s32.totalorder %s41, 0
      %p68 = por %p66, %p67
      %s70 = sadd.s32 %s69, 1
      %p73 = scmp.eq.s32.totalorder %s35, 1
      %p74 = scmp.ne.s32.totalorder %s69, %s71
      %p75 = scmp.eq.s32.totalorder %s35, 0
      %p76 = por %p74, %p75
      %p77 = scmp.ne.s32.totalorder %s69, %s71
      %p78 = scmp.eq.s32.totalorder %s40, 1
      %p79 = por %p77, %p78
      %p80 = scmp.ne.s32.totalorder %s71, %s72
      %p81 = scmp.eq.s32.totalorder %s40, 0
      %p82 = por %p80, %p81
      %p83 = scmp.ne.s32.totalorder %s71, %s72
      %p84 = scmp.eq.s32.totalorder %s41, 1
      %p85 = por %p83, %p84
      %p87 = scmp.ne.s32.totalorder %s72, %s86
      %p88 = scmp.eq.s32.totalorder %s41, 0
      %p89 = por %p87, %p88
      %s91 = sadd.s32 %s90, 1
      %p94 = scmp.eq.s32.totalorder %s35, 1
      %p95 = scmp.ne.s32.totalorder %s90, %s92
      %p96 = scmp.eq.s32.totalorder %s35, 0
      %p97 = por %p95, %p96
      %p98 = scmp.ne.s32.totalorder %s90, %s92
      %p99 = scmp.eq.s32.totalorder %s40, 1
      %p100 = por %p98, %p99
      %p101 = scmp.ne.s32.totalorder %s92, %s93
      %p102 = scmp.eq.s32.totalorder %s40, 0
      %p103 = por %p101, %p102
      %p104 = scmp.ne.s32.totalorder %s92, %s93
      %p105 = scmp.eq.s32.totalorder %s41, 1
      %p106 = por %p104, %p105
      %p108 = scmp.ne.s32.totalorder %s93, %s107
      %p109 = scmp.eq.s32.totalorder %s41, 0
      %p110 = por %p108, %p109
      %s112 = sadd.s32 %s111, 1
      %p115 = scmp.eq.s32.totalorder %s35, 1
      %p116 = scmp.ne.s32.totalorder %s111, %s113
      %p117 = scmp.eq.s32.totalorder %s35, 0
      %p118 = por %p116, %p117
      %p119 = scmp.ne.s32.totalorder %s111, %s113
      %p120 = scmp.eq.s32.totalorder %s40, 1
      %p121 = por %p119, %p120
      %p122 = scmp.ne.s32.totalorder %s113, %s114
      %p123 = scmp.eq.s32.totalorder %s40, 0
      %p124 = por %p122, %p123
      %p125 = scmp.ne.s32.totalorder %s113, %s114
      %p126 = scmp.eq.s32.totalorder %s41, 1
      %p127 = por %p125, %p126
      %p129 = scmp.ne.s32.totalorder %s114, %s128
      %p130 = scmp.eq.s32.totalorder %s41, 0
      %p131 = por %p129, %p130
      %s133 = sadd.s32 %s132, 1
      %p136 = scmp.eq.s32.totalorder %s35, 1
      %p137 = scmp.ne.s32.totalorder %s132, %s134
      %p138 = scmp.eq.s32.totalorder %s35, 0
      %p139 = por %p137, %p138
      %p140 = scmp.ne.s32.totalorder %s132, %s134
      %p141 = scmp.eq.s32.totalorder %s40, 1
      %p142 = por %p140, %p141
      %p143 = scmp.ne.s32.totalorder %s134, %s135
      %p144 = scmp.eq.s32.totalorder %s40, 0
      %p145 = por %p143, %p144
      %p146 = scmp.ne.s32.totalorder %s134, %s135
      %p147 = scmp.eq.s32.totalorder %s41, 1
      %p148 = por %p146, %p147
      %p150 = scmp.ne.s32.totalorder %s135, %s149
      %p151 = scmp.eq.s32.totalorder %s41, 0
      %p152 = por %p150, %p151
      %s154 = sadd.s32 %s153, 1
      %p157 = scmp.eq.s32.totalorder %s35, 1
      %p158 = scmp.ne.s32.totalorder %s153, %s155
      %p159 = scmp.eq.s32.totalorder %s35, 0
      %p160 = por %p158, %p159
      %p161 = scmp.ne.s32.totalorder %s153, %s155
      %p162 = scmp.eq.s32.totalorder %s40, 1
      %p163 = por %p161, %p162
      %p164 = scmp.ne.s32.totalorder %s155, %s156
      %p165 = scmp.eq.s32.totalorder %s40, 0
      %p166 = por %p164, %p165
      %p167 = scmp.ne.s32.totalorder %s155, %s156
      %p168 = scmp.eq.s32.totalorder %s41, 1
      %p169 = por %p167, %p168
      %p171 = scmp.ne.s32.totalorder %s156, %s170
      %p172 = scmp.eq.s32.totalorder %s41, 0
      %p173 = por %p171, %p172
      %s175 = sadd.s32 %s174, 1
      %p178 = scmp.eq.s32.totalorder %s35, 1
      %p179 = scmp.ne.s32.totalorder %s174, %s176
      %p180 = scmp.eq.s32.totalorder %s35, 0
      %p181 = por %p179, %p180
      %p182 = scmp.ne.s32.totalorder %s174, %s176
      %p183 = scmp.eq.s32.totalorder %s40, 1
      %p184 = por %p182, %p183
      %p185 = scmp.ne.s32.totalorder %s176, %s177
      %p186 = scmp.eq.s32.totalorder %s40, 0
      %p187 = por %p185, %p186
      %p188 = scmp.ne.s32.totalorder %s176, %s177
      %p189 = scmp.eq.s32.totalorder %s41, 1
      %p190 = por %p188, %p189
      %p192 = scmp.ne.s32.totalorder %s177, %s191
      %p193 = scmp.eq.s32.totalorder %s41, 0
      %p194 = por %p192, %p193
      %s196 = sadd.s32 %s195, 1
      %p199 = scmp.eq.s32.totalorder %s35, 1
      %p200 = scmp.ne.s32.totalorder %s195, %s197
      %p201 = scmp.eq.s32.totalorder %s35, 0
      %p202 = por %p200, %p201
      %p203 = scmp.ne.s32.totalorder %s195, %s197
      %p204 = scmp.eq.s32.totalorder %s40, 1
      %p205 = por %p203, %p204
      %p206 = scmp.ne.s32.totalorder %s197, %s198
      %p207 = scmp.eq.s32.totalorder %s40, 0
      %p208 = por %p206, %p207
      %p209 = scmp.ne.s32.totalorder %s197, %s198
      %p210 = scmp.eq.s32.totalorder %s41, 1
      %p211 = por %p209, %p210
      %p213 = scmp.ne.s32.totalorder %s198, %s212
      %p214 = scmp.eq.s32.totalorder %s41, 0
      %p215 = por %p213, %p214
      %s217 = sadd.s32 %s216, 1
      %p220 = scmp.eq.s32.totalorder %s35, 1
      %p221 = scmp.ne.s32.totalorder %s216, %s218
      %p222 = scmp.eq.s32.totalorder %s35, 0
      %p223 = por %p221, %p222
      %p224 = scmp.ne.s32.totalorder %s216, %s218
      %p225 = scmp.eq.s32.totalorder %s40, 1
      %p226 = por %p224, %p225
      %p227 = scmp.ne.s32.totalorder %s218, %s219
      %p228 = scmp.eq.s32.totalorder %s40, 0
      %p229 = por %p227, %p228
      %p230 = scmp.ne.s32.totalorder %s218, %s219
      %p231 = scmp.eq.s32.totalorder %s41, 1
      %p232 = por %p230, %p231
      %p234 = scmp.ne.s32.totalorder %s219, %s233
      %p235 = scmp.eq.s32.totalorder %s41, 0
      %p236 = por %p234, %p235
      %s238 = sadd.s32 %s237, 1
      %p241 = scmp.eq.s32.totalorder %s35, 1
      %p242 = scmp.ne.s32.totalorder %s237, %s239
      %p243 = scmp.eq.s32.totalorder %s35, 0
      %p244 = por %p242, %p243
      %p245 = scmp.ne.s32.totalorder %s237, %s239
      %p246 = scmp.eq.s32.totalorder %s40, 1
      %p247 = por %p245, %p246
      %p248 = scmp.ne.s32.totalorder %s239, %s240
      %p249 = scmp.eq.s32.totalorder %s40, 0
      %p250 = por %p248, %p249
      %p251 = scmp.ne.s32.totalorder %s239, %s240
      %p252 = scmp.eq.s32.totalorder %s41, 1
      %p253 = por %p251, %p252
      %p255 = scmp.ne.s32.totalorder %s240, %s254
      %p256 = scmp.eq.s32.totalorder %s41, 0
      %p257 = por %p255, %p256
      %s259 = sadd.s32 %s258, 1
      %p262 = scmp.eq.s32.totalorder %s35, 1
      %p263 = scmp.ne.s32.totalorder %s258, %s260
      %p264 = scmp.eq.s32.totalorder %s35, 0
      %p265 = por %p263, %p264
      %p266 = scmp.ne.s32.totalorder %s258, %s260
      %p267 = scmp.eq.s32.totalorder %s40, 1
      %p268 = por %p266, %p267
      %p269 = scmp.ne.s32.totalorder %s260, %s261
      %p270 = scmp.eq.s32.totalorder %s40, 0
      %p271 = por %p269, %p270
      %p272 = scmp.ne.s32.totalorder %s260, %s261
      %p273 = scmp.eq.s32.totalorder %s41, 1
      %p274 = por %p272, %p273
      %p276 = scmp.ne.s32.totalorder %s261, %s275
      %p277 = scmp.eq.s32.totalorder %s41, 0
      %p278 = por %p276, %p277
      %s280 = sadd.s32 %s279, 1
      %p283 = scmp.eq.s32.totalorder %s35, 1
      %p284 = scmp.ne.s32.totalorder %s279, %s281
      %p285 = scmp.eq.s32.totalorder %s35, 0
      %p286 = por %p284, %p285
      %p287 = scmp.ne.s32.totalorder %s279, %s281
      %p288 = scmp.eq.s32.totalorder %s40, 1
      %p289 = por %p287, %p288
      %p290 = scmp.ne.s32.totalorder %s281, %s282
      %p291 = scmp.eq.s32.totalorder %s40, 0
      %p292 = por %p290, %p291
      %p293 = scmp.ne.s32.totalorder %s281, %s282
      %p294 = scmp.eq.s32.totalorder %s41, 1
      %p295 = por %p293, %p294
      %p297 = scmp.ne.s32.totalorder %s282, %s296
      %p298 = scmp.eq.s32.totalorder %s41, 0
      %p299 = por %p297, %p298
      %s301 = sadd.s32 %s300, 1
      %p304 = scmp.eq.s32.totalorder %s35, 1
      %p305 = scmp.ne.s32.totalorder %s300, %s302
      %p306 = scmp.eq.s32.totalorder %s35, 0
      %p307 = por %p305, %p306
      %p308 = scmp.ne.s32.totalorder %s300, %s302
      %p309 = scmp.eq.s32.totalorder %s40, 1
      %p310 = por %p308, %p309
      %p311 = scmp.ne.s32.totalorder %s302, %s303
      %p312 = scmp.eq.s32.totalorder %s40, 0
      %p313 = por %p311, %p312
      %p314 = scmp.ne.s32.totalorder %s302, %s303
      %p315 = scmp.eq.s32.totalorder %s41, 1
      %p316 = por %p314, %p315
      %p318 = scmp.ne.s32.totalorder %s303, %s317
      %p319 = scmp.eq.s32.totalorder %s41, 0
      %p320 = por %p318, %p319
      %s322 = sadd.s32 %s321, 1
      %p325 = scmp.eq.s32.totalorder %s35, 1
      %p326 = scmp.ne.s32.totalorder %s321, %s323
      %p327 = scmp.eq.s32.totalorder %s35, 0
      %p328 = por %p326, %p327
      %p329 = scmp.ne.s32.totalorder %s321, %s323
      %p330 = scmp.eq.s32.totalorder %s40, 1
      %p331 = por %p329, %p330
      %p332 = scmp.ne.s32.totalorder %s323, %s324
      %p333 = scmp.eq.s32.totalorder %s40, 0
      %p334 = por %p332, %p333
      %p335 = scmp.ne.s32.totalorder %s323, %s324
      %p336 = scmp.eq.s32.totalorder %s41, 1
      %p337 = por %p335, %p336
      %p339 = scmp.ne.s32.totalorder %s324, %s338
      %p340 = scmp.eq.s32.totalorder %s41, 0
      %p341 = por %p339, %p340
      %s343 = sadd.s32 %s342, 1
      %p346 = scmp.eq.s32.totalorder %s35, 1
      %p347 = scmp.ne.s32.totalorder %s342, %s344
      %p348 = scmp.eq.s32.totalorder %s35, 0
      %p349 = por %p347, %p348
      %p350 = scmp.ne.s32.totalorder %s342, %s344
      %p351 = scmp.eq.s32.totalorder %s40, 1
      %p352 = por %p350, %p351
      %p353 = scmp.ne.s32.totalorder %s344, %s345
      %p354 = scmp.eq.s32.totalorder %s40, 0
      %p355 = por %p353, %p354
      %p356 = scmp.ne.s32.totalorder %s344, %s345
      %p357 = scmp.eq.s32.totalorder %s41, 1
      %p358 = por %p356, %p357
      %p360 = scmp.ne.s32.totalorder %s345, %s359
      %p361 = scmp.eq.s32.totalorder %s41, 0
      %p362 = por %p360, %p361
      %s364 = sadd.s32 %s363, 1
      %p367 = scmp.eq.s32.totalorder %s35, 1
      %p368 = scmp.ne.s32.totalorder %s363, %s365
      %p369 = scmp.eq.s32.totalorder %s35, 0
      %p370 = por %p368, %p369
      %p371 = scmp.ne.s32.totalorder %s363, %s365
      %p372 = scmp.eq.s32.totalorder %s40, 1
      %p373 = por %p371, %p372
      %p374 = scmp.ne.s32.totalorder %s365, %s366
      %p375 = scmp.eq.s32.totalorder %s40, 0
      %p376 = por %p374, %p375
      %p377 = scmp.ne.s32.totalorder %s365, %s366
      %p378 = scmp.eq.s32.totalorder %s41, 1
      %p379 = por %p377, %p378
      %p381 = scmp.ne.s32.totalorder %s366, %s380
      %p382 = scmp.eq.s32.totalorder %s41, 0
      %p383 = por %p381, %p382
      %s385 = sadd.s32 %s384, 1
      %p388 = scmp.eq.s32.totalorder %s35, 1
      %p389 = scmp.ne.s32.totalorder %s384, %s386
      %p390 = scmp.eq.s32.totalorder %s35, 0
      %p391 = por %p389, %p390
      %p392 = scmp.ne.s32.totalorder %s384, %s386
      %p393 = scmp.eq.s32.totalorder %s40, 1
      %p394 = por %p392, %p393
      %p395 = scmp.ne.s32.totalorder %s386, %s387
      %p396 = scmp.eq.s32.totalorder %s40, 0
      %p397 = por %p395, %p396
      %p398 = scmp.ne.s32.totalorder %s386, %s387
      %p399 = scmp.eq.s32.totalorder %s41, 1
      %p400 = por %p398, %p399
      %p402 = scmp.ne.s32.totalorder %s387, %s401
      %p403 = scmp.eq.s32.totalorder %s41, 0
      %p404 = por %p402, %p403
      %s405 = ssub.s32 %s35, %s42
      %p406 = scmp.eq.s32.totalorder %s405, 0
      %s408 = sadd.s32 %s407, 1
      %s409 = scalar_select %p406, %s407, %s408
      %p412 = pneg %p406
      %p413 = scmp.eq.s32.totalorder %s35, 1
      %p414 = por %p412, %p413
      %p415 = scmp.ne.s32.totalorder %s407, %s410
      %p416 = scmp.eq.s32.totalorder %s35, 0
      %p417 = por %p415, %p416
      %p418 = scmp.ne.s32.totalorder %s407, %s410
      %p419 = scmp.eq.s32.totalorder %s40, 1
      %p420 = por %p418, %p419
      %p421 = scmp.ne.s32.totalorder %s410, %s411
      %p422 = scmp.eq.s32.totalorder %s40, 0
      %p423 = por %p421, %p422
      %p424 = scmp.ne.s32.totalorder %s410, %s411
      %p425 = scmp.eq.s32.totalorder %s41, 1
      %p426 = por %p424, %p425
      %p428 = scmp.ne.s32.totalorder %s411, %s427
      %p429 = scmp.eq.s32.totalorder %s41, 0
      %p430 = por %p428, %p429
      %p431 = scmp.le.s32.totalorder 1, %s35
      %p432 = scmp.lt.s32.totalorder %s35, 3
      %p433 = pnand %p431, %p432
      %p434 = pneg %p433
      // Predicated region
      $region9: #{gdp_forward.1} parent=5 // pred_check
        _
      $region10: #{gdp_forward.1} parent=5 // pred_check_branch
        %436 = sbr.rel (%p433) target = $region12
      $region11: #{gdp_forward.1} parent=5 // pred_region
        %s437 = ssub.s32 %s35, 1
        // Predicated region
        $region13: #{gdp_forward.1} parent=11 // pred_check
          %p438 = pneg %p82
        $region14: #{gdp_forward.1} parent=11 // pred_check_branch
          %440 = sbr.rel (%p438) target = $region16
        $region15: #{gdp_forward.1} parent=11 // pred_region
          _
        $region16: #{gdp_forward.1} parent=11 // pred_fallthru
          _
        // Predicated region
        $region17: #{gdp_forward.1} parent=11 // pred_check
          %p441 = pneg %p103
        $region18: #{gdp_forward.1} parent=11 // pred_check_branch
          %443 = sbr.rel (%p441) target = $region20
        $region19: #{gdp_forward.1} parent=11 // pred_region
          _
        $region20: #{gdp_forward.1} parent=11 // pred_fallthru
          _
        // Predicated region
        $region21: #{gdp_forward.1} parent=11 // pred_check
          %p444 = pneg %p124
        $region22: #{gdp_forward.1} parent=11 // pred_check_branch
          %446 = sbr.rel (%p444) target = $region24
        $region23: #{gdp_forward.1} parent=11 // pred_region
          _
        $region24: #{gdp_forward.1} parent=11 // pred_fallthru
          _
        // Predicated region
        $region25: #{gdp_forward.1} parent=11 // pred_check
          %p447 = pneg %p145
        $region26: #{gdp_forward.1} parent=11 // pred_check_branch
          %449 = sbr.rel (%p447) target = $region28
        $region27: #{gdp_forward.1} parent=11 // pred_region
          _
        $region28: #{gdp_forward.1} parent=11 // pred_fallthru
          _
        // Predicated region
        $region29: #{gdp_forward.1} parent=11 // pred_check
          %p450 = pneg %p166
        $region30: #{gdp_forward.1} parent=11 // pred_check_branch
          %452 = sbr.rel (%p450) target = $region32
        $region31: #{gdp_forward.1} parent=11 // pred_region
          _
        $region32: #{gdp_forward.1} parent=11 // pred_fallthru
          _
        // Predicated region
        $region33: #{gdp_forward.1} parent=11 // pred_check
          %p453 = pneg %p187
        $region34: #{gdp_forward.1} parent=11 // pred_check_branch
          %455 = sbr.rel (%p453) target = $region36
        $region35: #{gdp_forward.1} parent=11 // pred_region
          _
        $region36: #{gdp_forward.1} parent=11 // pred_fallthru
          _
        // Predicated region
        $region37: #{gdp_forward.1} parent=11 // pred_check
          %p456 = pneg %p208
        $region38: #{gdp_forward.1} parent=11 // pred_check_branch
          %458 = sbr.rel (%p456) target = $region40
        $region39: #{gdp_forward.1} parent=11 // pred_region
          _
        $region40: #{gdp_forward.1} parent=11 // pred_fallthru
          _
        // Predicated region
        $region41: #{gdp_forward.1} parent=11 // pred_check
          %p459 = pneg %p229
        $region42: #{gdp_forward.1} parent=11 // pred_check_branch
          %461 = sbr.rel (%p459) target = $region44
        $region43: #{gdp_forward.1} parent=11 // pred_region
          _
        $region44: #{gdp_forward.1} parent=11 // pred_fallthru
          _
        // Predicated region
        $region45: #{gdp_forward.1} parent=11 // pred_check
          %p462 = pneg %p250
        $region46: #{gdp_forward.1} parent=11 // pred_check_branch
          %464 = sbr.rel (%p462) target = $region48
        $region47: #{gdp_forward.1} parent=11 // pred_region
          _
        $region48: #{gdp_forward.1} parent=11 // pred_fallthru
          _
        // Predicated region
        $region49: #{gdp_forward.1} parent=11 // pred_check
          %p465 = pneg %p271
        $region50: #{gdp_forward.1} parent=11 // pred_check_branch
          %467 = sbr.rel (%p465) target = $region52
        $region51: #{gdp_forward.1} parent=11 // pred_region
          _
        $region52: #{gdp_forward.1} parent=11 // pred_fallthru
          _
        // Predicated region
        $region53: #{gdp_forward.1} parent=11 // pred_check
          %p468 = pneg %p292
        $region54: #{gdp_forward.1} parent=11 // pred_check_branch
          %470 = sbr.rel (%p468) target = $region56
        $region55: #{gdp_forward.1} parent=11 // pred_region
          _
        $region56: #{gdp_forward.1} parent=11 // pred_fallthru
          _
        // Predicated region
        $region57: #{gdp_forward.1} parent=11 // pred_check
          %p471 = pneg %p313
        $region58: #{gdp_forward.1} parent=11 // pred_check_branch
          %473 = sbr.rel (%p471) target = $region60
        $region59: #{gdp_forward.1} parent=11 // pred_region
          _
        $region60: #{gdp_forward.1} parent=11 // pred_fallthru
          _
        // Predicated region
        $region61: #{gdp_forward.1} parent=11 // pred_check
          %p474 = pneg %p334
        $region62: #{gdp_forward.1} parent=11 // pred_check_branch
          %476 = sbr.rel (%p474) target = $region64
        $region63: #{gdp_forward.1} parent=11 // pred_region
          _
        $region64: #{gdp_forward.1} parent=11 // pred_fallthru
          _
        // Predicated region
        $region65: #{gdp_forward.1} parent=11 // pred_check
          %p477 = pneg %p355
        $region66: #{gdp_forward.1} parent=11 // pred_check_branch
          %479 = sbr.rel (%p477) target = $region68
        $region67: #{gdp_forward.1} parent=11 // pred_region
          _
        $region68: #{gdp_forward.1} parent=11 // pred_fallthru
          _
        // Predicated region
        $region69: #{gdp_forward.1} parent=11 // pred_check
          %p480 = pneg %p376
        $region70: #{gdp_forward.1} parent=11 // pred_check_branch
          %482 = sbr.rel (%p480) target = $region72
        $region71: #{gdp_forward.1} parent=11 // pred_region
          _
        $region72: #{gdp_forward.1} parent=11 // pred_fallthru
          _
        // Predicated region
        $region73: #{gdp_forward.1} parent=11 // pred_check
          %p483 = pneg %p397
        $region74: #{gdp_forward.1} parent=11 // pred_check_branch
          %485 = sbr.rel (%p483) target = $region76
        $region75: #{gdp_forward.1} parent=11 // pred_region
          _
        $region76: #{gdp_forward.1} parent=11 // pred_fallthru
          _
      $region12: #{gdp_forward.1} parent=5 // pred_fallthru
        _
      %p486 = scmp.lt.s32.totalorder %s35, 2
      // Predicated region
      $region77: #{gdp_forward.1} parent=5 // pred_check
        %p487 = pneg %p486
      $region78: #{gdp_forward.1} parent=5 // pred_check_branch
        %489 = sbr.rel (%p487) target = $region80
      $region79: #{gdp_forward.1} parent=5 // pred_region
        // Predicated region
        $region81: #{gdp_forward.1} parent=79 // pred_check
          %p490 = pneg %p55
        $region82: #{gdp_forward.1} parent=79 // pred_check_branch
          %492 = sbr.rel (%p490) target = $region84
        $region83: #{gdp_forward.1} parent=79 // pred_region
          %p493 = scmp.lt.s32.totalorder %s35, 1
          %s494 = scalar_select %p493, %s35, 1
          %s495 = smul.addr %s494, 8
          %s496 = smul.addr %s495, 8
          %s497 = scalar_lea.vmem %s1, %s496
        $region84: #{gdp_forward.1} parent=79 // pred_fallthru
          _
      $region80: #{gdp_forward.1} parent=5 // pred_fallthru
        _
      %p498 = scmp.le.s32.totalorder 1, %s35
      %p499 = scmp.lt.s32.totalorder %s35, 3
      %p500 = pnand %p498, %p499
      %p501 = pneg %p500
      // Predicated region
      $region85: #{gdp_forward.1} parent=5 // pred_check
        _
      $region86: #{gdp_forward.1} parent=5 // pred_check_branch
        %503 = sbr.rel (%p500) target = $region88
      $region87: #{gdp_forward.1} parent=5 // pred_region
        %s504 = ssub.s32 %s35, 1
        %p505 = scmp.lt.s32.totalorder %s40, 1
        %s506 = scalar_select %p505, %s40, 1
        %s507 = smul.addr %s506, 8
        %s508 = smul.addr %s507, 8
        %s509 = scalar_lea.vmem %s1, %s508
        %p510 = pneg %p61
        %p511 = pneg %p58
        %p512 = pneg %p82
        %p513 = pneg %p79
        %p514 = pneg %p103
        %p515 = pneg %p100
        %p516 = pneg %p124
        %p517 = pneg %p121
        %p518 = pneg %p145
        %p519 = pneg %p142
        %p520 = pneg %p166
        %p521 = pneg %p163
        %p522 = pneg %p187
        %p523 = pneg %p184
        %p524 = pneg %p208
        %p525 = pneg %p205
        %p526 = pneg %p229
        %p527 = pneg %p226
        %p528 = pneg %p250
        %p529 = pneg %p247
        %p530 = pneg %p271
        %p531 = pneg %p268
        %p532 = pneg %p292
        %p533 = pneg %p289
        %p534 = pneg %p313
        %p535 = pneg %p310
        %p536 = pneg %p334
        %p537 = pneg %p331
        %p538 = pneg %p355
        %p539 = pneg %p352
        %p540 = pneg %p376
        %p541 = pneg %p373
        %p542 = pneg %p397
        %p543 = pneg %p394
        %p544 = pneg %p423
        %p545 = pneg %p420
        %s546 = sand.u32 %s410, 1
        %s547 = scalar_lea.sflag [#allocation9], %s546
        %s548 = sand.u32 %s410, 1
        %s549 = smul.addr %s548, 32
        %s550 = scalar_lea.vmem [#allocation8], %s549
        %p551 = scmp.lt.s32.totalorder %s40, 1
        %s552 = scalar_select %p551, %s40, 1
        %s553 = smul.addr %s552, 8
        %s554 = smul.addr %s553, 8
        %s555 = scalar_lea.vmem %s1, %s554
        %v557 = vld [vmem:[%s555] sm:$0xff]
        %v558 = vld [vmem:[%s555 + $0x8] sm:$0xff]
        %v559 = vld [vmem:[%s555 + $0x10] sm:$0xff]
        %v560 = vld [vmem:[%s555 + $0x18] sm:$0xff]
        %v561 = vld [vmem:[%s555 + $0x20] sm:$0xff]
        %v562 = vld [vmem:[%s555 + $0x28] sm:$0xff]
        %v563 = vld [vmem:[%s555 + $0x30] sm:$0xff]
        %v564 = vld [vmem:[%s555 + $0x38] sm:$0xff]
        %v565 = vpack.c.bf16 %v558, %v557
        %v566 = vpack.c.bf16 %v560, %v559
        %v567 = vpack.c.bf16 %v562, %v561
        %v568 = vpack.c.bf16 %v564, %v563
        %v569 = vld [vmem:[%s2] sm:$0xf]
        %v570 = vld [vmem:[%s2 + $0x4] sm:$0xf]
        %v571 = vld [vmem:[%s2 + $0x8] sm:$0xf]
        %v572 = vld [vmem:[%s2 + $0xc] sm:$0xf]
        %v573 = vld [vmem:[%s2 + $0x10] sm:$0xf]
        %v574 = vld [vmem:[%s2 + $0x14] sm:$0xf]
        %v575 = vld [vmem:[%s2 + $0x18] sm:$0xf]
        %v576 = vld [vmem:[%s2 + $0x1c] sm:$0xf]
        %v577 = vld [vmem:[%s2 + $0x20] sm:$0xf]
        %v578 = vld [vmem:[%s2 + $0x24] sm:$0xf]
        %v579 = vld [vmem:[%s2 + $0x28] sm:$0xf]
        %v580 = vld [vmem:[%s2 + $0x2c] sm:$0xf]
        %v581 = vld [vmem:[%s2 + $0x30] sm:$0xf]
        %v582 = vld [vmem:[%s2 + $0x34] sm:$0xf]
        %v583 = vld [vmem:[%s2 + $0x38] sm:$0xf]
        %v584 = vld [vmem:[%s2 + $0x3c] sm:$0xf]
        %v585 = vld [vmem:[%s3] sm:$0x1]
        %v587 = vperm.slane %v585, 0
        %v605 = vunpack.c.l.b16 %v569
        %v606 = vunpack.c.l.b16 %v570
        %v607 = vunpack.c.l.b16 %v571
        %v608 = vunpack.c.l.b16 %v572
        %v609 = vunpack.c.l.b16 %v573
        %v610 = vunpack.c.l.b16 %v574
        %v611 = vunpack.c.l.b16 %v575
        %v612 = vunpack.c.l.b16 %v576
        %v613 = vunpack.c.l.b16 %v577
        %v614 = vunpack.c.l.b16 %v578
        %v615 = vunpack.c.l.b16 %v579
        %v616 = vunpack.c.l.b16 %v580
        %v617 = vunpack.c.l.b16 %v581
        %v618 = vunpack.c.l.b16 %v582
        %v619 = vunpack.c.l.b16 %v583
        %v620 = vunpack.c.l.b16 %v584
        %v621 = vpack.c.b16 %v606, %v605
        %v622 = vpack.c.b16 %v608, %v607
        %v623 = vpack.c.b16 %v610, %v609
        %v624 = vpack.c.b16 %v612, %v611
        %v625 = vpack.c.b16 %v614, %v613
        %v626 = vpack.c.b16 %v616, %v615
        %v627 = vpack.c.b16 %v618, %v617
        %v628 = vpack.c.b16 %v620, %v619
        %637 = vmatpush.bf16.msra.mxu0 %v628
        %638 = vmatpush.bf16.msra.mxu0 %v627
        %639 = vmatpush.bf16.msra.mxu0 %v626
        %640 = vmatpush.bf16.msra.mxu0 %v625
        %641 = vmatpush.bf16.msra.mxu0 %v624
        %642 = vmatpush.bf16.msra.mxu0 %v623
        %643 = vmatpush.bf16.msra.mxu0 %v622
        %644 = vmatpush.bf16.msra.mxu0 %v621
        %645 = vmatmul.bf16.gmra.mxu0 %v565
        %v646 = vpop.f32.mrf.mxu0
        %v647 = vadd.f32 %v587, %v646
        %v648 = vpop.f32.mrf.mxu0
        %v649 = vadd.f32 %v587, %v648
        %650 = vmatmul.bf16.gmra.mxu0 %v566
        %v651 = vpop.f32.mrf.mxu0
        %v652 = vadd.f32 %v587, %v651
        %v653 = vpop.f32.mrf.mxu0
        %v654 = vadd.f32 %v587, %v653
        %655 = vmatmul.bf16.gmra.mxu0 %v567
        %v656 = vpop.f32.mrf.mxu0
        %v657 = vadd.f32 %v587, %v656
        %v658 = vpop.f32.mrf.mxu0
        %v659 = vadd.f32 %v587, %v658
        %660 = vmatmul.bf16.gmra.mxu0 %v568
        %v661 = vpop.f32.mrf.mxu0
        %v662 = vadd.f32 %v587, %v661
        %v663 = vpop.f32.mrf.mxu0
        %v664 = vadd.f32 %v587, %v663
        %665 = vdwg.mxu0
        %v666 = vld [vmem:[%s4] sm:$0x1]
        %v667 = vld [vmem:[%s5] sm:$0x1]
        %668 = vadd.xlane.f32.xlu0 %v647
        %v669 = vpop.xlane.xlu0 %668
        %670 = vadd.xlane.f32.xlu0 %v649
        %v671 = vpop.xlane.xlu0 %670
        %672 = vadd.xlane.f32.xlu0 %v652
        %v673 = vpop.xlane.xlu0 %672
        %674 = vadd.xlane.f32.xlu0 %v654
        %v675 = vpop.xlane.xlu0 %674
        %676 = vadd.xlane.f32.xlu0 %v657
        %v677 = vpop.xlane.xlu0 %676
        %678 = vadd.xlane.f32.xlu0 %v659
        %v679 = vpop.xlane.xlu0 %678
        %680 = vadd.xlane.f32.xlu0 %v662
        %v681 = vpop.xlane.xlu0 %680
        %682 = vadd.xlane.f32.xlu0 %v664
        %v683 = vpop.xlane.xlu0 %682
        %v684 = vrcp.pop 128.0
        %v685 = vmul.f32 128.0, %v684
        %v686 = vsub.f32 1.0, %v685
        %v687 = vmul.f32 %v684, %v686
        %v688 = vadd.f32 %v684, %v687
        %vm689 = vweird.f32 %v684
        %v690 = vsel %vm689, %v684, %v688
        %v691 = vmul.f32 %v669, %v690
        %v692 = vmul.f32 %v671, %v690
        %v693 = vmul.f32 %v673, %v690
        %v694 = vmul.f32 %v675, %v690
        %v695 = vmul.f32 %v677, %v690
        %v696 = vmul.f32 %v679, %v690
        %v697 = vmul.f32 %v681, %v690
        %v698 = vmul.f32 %v683, %v690
        %v699 = vsub.f32 %v647, %v691
        %v700 = vsub.f32 %v649, %v692
        %v701 = vsub.f32 %v652, %v693
        %v702 = vsub.f32 %v654, %v694
        %v703 = vsub.f32 %v657, %v695
        %v704 = vsub.f32 %v659, %v696
        %v705 = vsub.f32 %v662, %v697
        %v706 = vsub.f32 %v664, %v698
        %v707 = vmul.f32 %v699, %v699
        %v708 = vmul.f32 %v700, %v700
        %v709 = vmul.f32 %v701, %v701
        %v710 = vmul.f32 %v702, %v702
        %v711 = vmul.f32 %v703, %v703
        %v712 = vmul.f32 %v704, %v704
        %v713 = vmul.f32 %v705, %v705
        %v714 = vmul.f32 %v706, %v706
        %715 = vadd.xlane.f32.xlu0 %v707
        %v716 = vpop.xlane.xlu0 %715
        %717 = vadd.xlane.f32.xlu0 %v708
        %v718 = vpop.xlane.xlu0 %717
        %719 = vadd.xlane.f32.xlu0 %v709
        %v720 = vpop.xlane.xlu0 %719
        %721 = vadd.xlane.f32.xlu0 %v710
        %v722 = vpop.xlane.xlu0 %721
        %723 = vadd.xlane.f32.xlu0 %v711
        %v724 = vpop.xlane.xlu0 %723
        %725 = vadd.xlane.f32.xlu0 %v712
        %v726 = vpop.xlane.xlu0 %725
        %727 = vadd.xlane.f32.xlu0 %v713
        %v728 = vpop.xlane.xlu0 %727
        %729 = vadd.xlane.f32.xlu0 %v714
        %v730 = vpop.xlane.xlu0 %729
        %v731 = vmul.f32 %v716, %v690
        %v732 = vmul.f32 %v718, %v690
        %v733 = vmul.f32 %v720, %v690
        %v734 = vmul.f32 %v722, %v690
        %v735 = vmul.f32 %v724, %v690
        %v736 = vmul.f32 %v726, %v690
        %v737 = vmul.f32 %v728, %v690
        %v738 = vmul.f32 %v730, %v690
        %v739 = vadd.f32 %v731, 1e-05
        %v740 = vadd.f32 %v732, 1e-05
        %v741 = vadd.f32 %v733, 1e-05
        %v742 = vadd.f32 %v734, 1e-05
        %v743 = vadd.f32 %v735, 1e-05
        %v744 = vadd.f32 %v736, 1e-05
        %v745 = vadd.f32 %v737, 1e-05
        %v746 = vadd.f32 %v738, 1e-05
        %v747 = vrsqrt.pop %v739
        %v748 = vmul.f32 %v747, %v739
        %v749 = vmul.f32 %v748, %v747
        %v750 = vmul.f32 0.5, %v749
        %v751 = vsub.f32 1.5, %v750
        %v752 = vmul.f32 %v747, %v751
        %vm753 = vweird.f32 %v739
        %vm754 = vweird.f32 %v747
        %vm755 = vmor %vm753, %vm754
        %v756 = vsel %vm755, %v747, %v752
        %v757 = vrsqrt.pop %v740
        %v758 = vmul.f32 %v757, %v740
        %v759 = vmul.f32 %v758, %v757
        %v760 = vmul.f32 0.5, %v759
        %v761 = vsub.f32 1.5, %v760
        %v762 = vmul.f32 %v757, %v761
        %vm763 = vweird.f32 %v740
        %vm764 = vweird.f32 %v757
        %vm765 = vmor %vm763, %vm764
        %v766 = vsel %vm765, %v757, %v762
        %v767 = vrsqrt.pop %v741
        %v768 = vmul.f32 %v767, %v741
        %v769 = vmul.f32 %v768, %v767
        %v770 = vmul.f32 0.5, %v769
        %v771 = vsub.f32 1.5, %v770
        %v772 = vmul.f32 %v767, %v771
        %vm773 = vweird.f32 %v741
        %vm774 = vweird.f32 %v767
        %vm775 = vmor %vm773, %vm774
        %v776 = vsel %vm775, %v767, %v772
        %v777 = vrsqrt.pop %v742
        %v778 = vmul.f32 %v777, %v742
        %v779 = vmul.f32 %v778, %v777
        %v780 = vmul.f32 0.5, %v779
        %v781 = vsub.f32 1.5, %v780
        %v782 = vmul.f32 %v777, %v781
        %vm783 = vweird.f32 %v742
        %vm784 = vweird.f32 %v777
        %vm785 = vmor %vm783, %vm784
        %v786 = vsel %vm785, %v777, %v782
        %v787 = vrsqrt.pop %v743
        %v788 = vmul.f32 %v787, %v743
        %v789 = vmul.f32 %v788, %v787
        %v790 = vmul.f32 0.5, %v789
        %v791 = vsub.f32 1.5, %v790
        %v792 = vmul.f32 %v787, %v791
        %vm793 = vweird.f32 %v743
        %vm794 = vweird.f32 %v787
        %vm795 = vmor %vm793, %vm794
        %v796 = vsel %vm795, %v787, %v792
        %v797 = vrsqrt.pop %v744
        %v798 = vmul.f32 %v797, %v744
        %v799 = vmul.f32 %v798, %v797
        %v800 = vmul.f32 0.5, %v799
        %v801 = vsub.f32 1.5, %v800
        %v802 = vmul.f32 %v797, %v801
        %vm803 = vweird.f32 %v744
        %vm804 = vweird.f32 %v797
        %vm805 = vmor %vm803, %vm804
        %v806 = vsel %vm805, %v797, %v802
        %v807 = vrsqrt.pop %v745
        %v808 = vmul.f32 %v807, %v745
        %v809 = vmul.f32 %v808, %v807
        %v810 = vmul.f32 0.5, %v809
        %v811 = vsub.f32 1.5, %v810
        %v812 = vmul.f32 %v807, %v811
        %vm813 = vweird.f32 %v745
        %vm814 = vweird.f32 %v807
        %vm815 = vmor %vm813, %vm814
        %v816 = vsel %vm815, %v807, %v812
        %v817 = vrsqrt.pop %v746
        %v818 = vmul.f32 %v817, %v746
        %v819 = vmul.f32 %v818, %v817
        %v820 = vmul.f32 0.5, %v819
        %v821 = vsub.f32 1.5, %v820
        %v822 = vmul.f32 %v817, %v821
        %vm823 = vweird.f32 %v746
        %vm824 = vweird.f32 %v817
        %vm825 = vmor %vm823, %vm824
        %v826 = vsel %vm825, %v817, %v822
        %v827 = vmul.f32 %v699, %v756
        %v828 = vmul.f32 %v700, %v766
        %v829 = vmul.f32 %v701, %v776
        %v830 = vmul.f32 %v702, %v786
        %v831 = vmul.f32 %v703, %v796
        %v832 = vmul.f32 %v704, %v806
        %v833 = vmul.f32 %v705, %v816
        %v834 = vmul.f32 %v706, %v826
        %v836 = vperm.slane %v666, 0
        %v838 = vmul.f32 %v827, %v836
        %v839 = vmul.f32 %v828, %v836
        %v840 = vmul.f32 %v829, %v836
        %v841 = vmul.f32 %v830, %v836
        %v842 = vmul.f32 %v831, %v836
        %v843 = vmul.f32 %v832, %v836
        %v844 = vmul.f32 %v833, %v836
        %v845 = vmul.f32 %v834, %v836
        %v847 = vperm.slane %v667, 0
        %v849 = vadd.f32 %v838, %v847
        %v850 = vadd.f32 %v839, %v847
        %v851 = vadd.f32 %v840, %v847
        %v852 = vadd.f32 %v841, %v847
        %v853 = vadd.f32 %v842, %v847
        %v854 = vadd.f32 %v843, %v847
        %v855 = vadd.f32 %v844, %v847
        %v856 = vadd.f32 %v845, %v847
        %857 = vst [vmem:[#allocation2] sm:$0xff] %v849
        %858 = vst [vmem:[#allocation2 + $0x8] sm:$0xff] %v850
        %859 = vst [vmem:[#allocation2 + $0x10] sm:$0xff] %v851
        %860 = vst [vmem:[#allocation2 + $0x18] sm:$0xff] %v852
        %861 = vst [vmem:[#allocation2 + $0x20] sm:$0xff] %v853
        %862 = vst [vmem:[#allocation2 + $0x28] sm:$0xff] %v854
        %863 = vst [vmem:[#allocation2 + $0x30] sm:$0xff] %v855
        %864 = vst [vmem:[#allocation2 + $0x38] sm:$0xff] %v856
        loop: start=0, step=1, limit=16
        $region89: #{gdp_forward.1} parent=87 // loop_pre_header
          _
        $region90: #{gdp_forward.1} parent=87 // loop_header
          %s866 = sphi 0, %s870
          %p867 = scmp.ge.s32.totalorder %s866, 16
        $region91: #{gdp_forward.1} parent=87 // loop_header_branch
          %869 = sbr.rel (%p867) target = $region95
        $region92: #{gdp_forward.1} parent=87 // loop_body
          %s871 = sshra.s32 %s866, 7
          %s872 = sand.u32 %s866, 127
          %s873 = sadd.s32 %s871, %s40
          %s874 = smul.u32 %s873, 128
          %s875 = sshra.s32 %s866, 7
          %s876 = sand.u32 %s866, 127
          %s877 = sadd.s32 %s874, %s876
          %s878 = sld [smem:[#allocation7 + %s877]]
          %s879 = scalar_lea.vmem %s555, %s878
          %v880 = vld [vmem:[%s879] sm:$0x1]
          %s881 = scalar_lea.vmem [#allocation3], %s866
          %882 = vst [vmem:[%s881] sm:$0x1] %v880
          %s883 = scalar_lea.vmem [#allocation2], %s878
          %v884 = vld [vmem:[%s883] sm:$0x1]
          %s885 = scalar_lea.vmem [#allocation4], %s866
          %886 = vst [vmem:[%s885] sm:$0x1] %v884
        $region93: #{gdp_forward.1} parent=87 // loop_footer
          %s870 = sadd.s32 1, %s866
        $region94: #{gdp_forward.1} parent=87 // loop_footer_branch
          %865 = sbr.rel target = $region90
        $region95: #{gdp_forward.1} parent=87 // loop_exit
          _
        %v887 = vld [vmem:[#allocation3] sm:$0xff]
        %v888 = vld [vmem:[#allocation3 + $0x8] sm:$0xff]
        %889 = vst [vmem:[%s550] sm:$0xff] %v887
        %890 = vst [vmem:[%s550 + $0x10] sm:$0xff] %v888
        %v891 = vld [vmem:[#allocation4] sm:$0xff]
        %v892 = vld [vmem:[#allocation4 + $0x8] sm:$0xff]
        %v893 = vpack.c.bf16 %v892, %v891
        %v894 = vld [vmem:[%s6] sm:$0xf]
        %v895 = vld [vmem:[%s6 + $0x4] sm:$0xf]
        %v896 = vld [vmem:[%s6 + $0x8] sm:$0xf]
        %v897 = vld [vmem:[%s6 + $0xc] sm:$0xf]
        %v898 = vld [vmem:[%s6 + $0x10] sm:$0xf]
        %v899 = vld [vmem:[%s6 + $0x14] sm:$0xf]
        %v900 = vld [vmem:[%s6 + $0x18] sm:$0xf]
        %v901 = vld [vmem:[%s6 + $0x1c] sm:$0xf]
        %v902 = vld [vmem:[%s6 + $0x20] sm:$0xf]
        %v903 = vld [vmem:[%s6 + $0x24] sm:$0xf]
        %v904 = vld [vmem:[%s6 + $0x28] sm:$0xf]
        %v905 = vld [vmem:[%s6 + $0x2c] sm:$0xf]
        %v906 = vld [vmem:[%s6 + $0x30] sm:$0xf]
        %v907 = vld [vmem:[%s6 + $0x34] sm:$0xf]
        %v908 = vld [vmem:[%s6 + $0x38] sm:$0xf]
        %v909 = vld [vmem:[%s6 + $0x3c] sm:$0xf]
        %v910 = vld [vmem:[%s7] sm:$0x1]
        %v912 = vperm.slane %v910, 0
        %v930 = vunpack.c.l.b16 %v894
        %v931 = vunpack.c.l.b16 %v895
        %v932 = vunpack.c.l.b16 %v896
        %v933 = vunpack.c.l.b16 %v897
        %v934 = vunpack.c.l.b16 %v898
        %v935 = vunpack.c.l.b16 %v899
        %v936 = vunpack.c.l.b16 %v900
        %v937 = vunpack.c.l.b16 %v901
        %v938 = vunpack.c.l.b16 %v902
        %v939 = vunpack.c.l.b16 %v903
        %v940 = vunpack.c.l.b16 %v904
        %v941 = vunpack.c.l.b16 %v905
        %v942 = vunpack.c.l.b16 %v906
        %v943 = vunpack.c.l.b16 %v907
        %v944 = vunpack.c.l.b16 %v908
        %v945 = vunpack.c.l.b16 %v909
        %v946 = vpack.c.b16 %v931, %v930
        %v947 = vpack.c.b16 %v933, %v932
        %v948 = vpack.c.b16 %v935, %v934
        %v949 = vpack.c.b16 %v937, %v936
        %v950 = vpack.c.b16 %v939, %v938
        %v951 = vpack.c.b16 %v941, %v940
        %v952 = vpack.c.b16 %v943, %v942
        %v953 = vpack.c.b16 %v945, %v944
        %962 = vmatpush.bf16.msra.mxu0 %v953
        %963 = vmatpush.bf16.msra.mxu0 %v952
        %964 = vmatpush.bf16.msra.mxu0 %v951
        %965 = vmatpush.bf16.msra.mxu0 %v950
        %966 = vmatpush.bf16.msra.mxu0 %v949
        %967 = vmatpush.bf16.msra.mxu0 %v948
        %968 = vmatpush.bf16.msra.mxu0 %v947
        %969 = vmatpush.bf16.msra.mxu0 %v946
        %970 = vmatmul.bf16.gmra.mxu0 %v893
        %v971 = vpop.f32.mrf.mxu0
        %v972 = vadd.f32 %v912, %v971
        %v973 = vpop.f32.mrf.mxu0
        %v974 = vadd.f32 %v912, %v973
        %975 = vdwg.mxu0
        %v976 = vpack.c.bf16 %v972, %v972
        %v977 = vpack.c.bf16 %v974, %v974
        %v978 = vpack.c.bf16 %v850, %v849
        %v979 = vpack.c.bf16 %v852, %v851
        %v980 = vpack.c.bf16 %v854, %v853
        %v981 = vpack.c.bf16 %v856, %v855
        %v982 = vld [vmem:[%s8] sm:$0xff]
        %v983 = vld [vmem:[%s8 + $0x8] sm:$0xff]
        %v984 = vld [vmem:[%s8 + $0x10] sm:$0xff]
        %v985 = vld [vmem:[%s8 + $0x18] sm:$0xff]
        %v986 = vld [vmem:[%s8 + $0x20] sm:$0xff]
        %v987 = vld [vmem:[%s8 + $0x28] sm:$0xff]
        %v988 = vld [vmem:[%s8 + $0x30] sm:$0xff]
        %v989 = vld [vmem:[%s8 + $0x38] sm:$0xff]
        %v990 = vld [vmem:[%s8 + $0x40] sm:$0xff]
        %v991 = vld [vmem:[%s8 + $0x48] sm:$0xff]
        %v992 = vld [vmem:[%s8 + $0x50] sm:$0xff]
        %v993 = vld [vmem:[%s8 + $0x58] sm:$0xff]
        %v994 = vld [vmem:[%s8 + $0x60] sm:$0xff]
        %v995 = vld [vmem:[%s8 + $0x68] sm:$0xff]
        %v996 = vld [vmem:[%s8 + $0x70] sm:$0xff]
        %v997 = vld [vmem:[%s8 + $0x78] sm:$0xff]
        %v998 = vld [vmem:[%s9] sm:$0x3]
        %v1000 = vperm.slane %v998, 0
        %v1001 = vperm.slane %v998, 1
        %v1020 = vunpack.c.l.b16 %v982
        %v1021 = vunpack.c.h.b16 %v982
        %v1022 = vunpack.c.l.b16 %v983
        %v1023 = vunpack.c.h.b16 %v983
        %v1024 = vunpack.c.l.b16 %v984
        %v1025 = vunpack.c.h.b16 %v984
        %v1026 = vunpack.c.l.b16 %v985
        %v1027 = vunpack.c.h.b16 %v985
        %v1028 = vunpack.c.l.b16 %v986
        %v1029 = vunpack.c.h.b16 %v986
        %v1030 = vunpack.c.l.b16 %v987
        %v1031 = vunpack.c.h.b16 %v987
        %v1032 = vunpack.c.l.b16 %v988
        %v1033 = vunpack.c.h.b16 %v988
        %v1034 = vunpack.c.l.b16 %v989
        %v1035 = vunpack.c.h.b16 %v989
        %v1036 = vunpack.c.l.b16 %v990
        %v1037 = vunpack.c.h.b16 %v990
        %v1038 = vunpack.c.l.b16 %v991
        %v1039 = vunpack.c.h.b16 %v991
        %v1040 = vunpack.c.l.b16 %v992
        %v1041 = vunpack.c.h.b16 %v992
        %v1042 = vunpack.c.l.b16 %v993
        %v1043 = vunpack.c.h.b16 %v993
        %v1044 = vunpack.c.l.b16 %v994
        %v1045 = vunpack.c.h.b16 %v994
        %v1046 = vunpack.c.l.b16 %v995
        %v1047 = vunpack.c.h.b16 %v995
        %v1048 = vunpack.c.l.b16 %v996
        %v1049 = vunpack.c.h.b16 %v996
        %v1050 = vunpack.c.l.b16 %v997
        %v1051 = vunpack.c.h.b16 %v997
        %v1052 = vpack.c.b16 %v1022, %v1020
        %v1053 = vpack.c.b16 %v1023, %v1021
        %v1054 = vpack.c.b16 %v1026, %v1024
        %v1055 = vpack.c.b16 %v1027, %v1025
        %v1056 = vpack.c.b16 %v1030, %v1028
        %v1057 = vpack.c.b16 %v1031, %v1029
        %v1058 = vpack.c.b16 %v1034, %v1032
        %v1059 = vpack.c.b16 %v1035, %v1033
        %v1060 = vpack.c.b16 %v1038, %v1036
        %v1061 = vpack.c.b16 %v1039, %v1037
        %v1062 = vpack.c.b16 %v1042, %v1040
        %v1063 = vpack.c.b16 %v1043, %v1041
        %v1064 = vpack.c.b16 %v1046, %v1044
        %v1065 = vpack.c.b16 %v1047, %v1045
        %v1066 = vpack.c.b16 %v1050, %v1048
        %v1067 = vpack.c.b16 %v1051, %v1049
        %1084 = vmatpush.bf16.msra.mxu0 %v1066
        %1085 = vmatpush.bf16.msra.mxu0 %v1064
        %1086 = vmatpush.bf16.msra.mxu0 %v1062
        %1087 = vmatpush.bf16.msra.mxu0 %v1060
        %1088 = vmatpush.bf16.msra.mxu0 %v1058
        %1089 = vmatpush.bf16.msra.mxu0 %v1056
        %1090 = vmatpush.bf16.msra.mxu0 %v1054
        %1091 = vmatpush.bf16.msra.mxu0 %v1052
        %1092 = vmatmul.bf16.gmra.mxu0 %v978
        %v1093 = vpop.f32.mrf.mxu0
        %v1094 = vadd.f32 %v1000, %v1093
        %v1095 = vpop.f32.mrf.mxu0
        %v1096 = vadd.f32 %v1000, %v1095
        %1097 = vmatmul.bf16.gmra.mxu0 %v979
        %v1098 = vpop.f32.mrf.mxu0
        %v1099 = vadd.f32 %v1000, %v1098
        %v1100 = vpop.f32.mrf.mxu0
        %v1101 = vadd.f32 %v1000, %v1100
        %1102 = vmatmul.bf16.gmra.mxu0 %v980
        %v1103 = vpop.f32.mrf.mxu0
        %v1104 = vadd.f32 %v1000, %v1103
        %v1105 = vpop.f32.mrf.mxu0
        %v1106 = vadd.f32 %v1000, %v1105
        %1107 = vmatmul.bf16.gmra.mxu0 %v981
        %v1108 = vpop.f32.mrf.mxu0
        %v1109 = vadd.f32 %v1000, %v1108
        %v1110 = vpop.f32.mrf.mxu0
        %v1111 = vadd.f32 %v1000, %v1110
        %1112 = vdwg.mxu0
        %1113 = vmatpush.bf16.msra.mxu0 %v1067
        %1114 = vmatpush.bf16.msra.mxu0 %v1065
        %1115 = vmatpush.bf16.msra.mxu0 %v1063
        %1116 = vmatpush.bf16.msra.mxu0 %v1061
        %1117 = vmatpush.bf16.msra.mxu0 %v1059
        %1118 = vmatpush.bf16.msra.mxu0 %v1057
        %1119 = vmatpush.bf16.msra.mxu0 %v1055
        %1120 = vmatpush.bf16.msra.mxu0 %v1053
        %1121 = vmatmul.bf16.gmra.mxu0 %v978
        %v1122 = vpop.f32.mrf.mxu0
        %v1123 = vadd.f32 %v1001, %v1122
        %v1124 = vpop.f32.mrf.mxu0
        %v1125 = vadd.f32 %v1001, %v1124
        %1126 = vmatmul.bf16.gmra.mxu0 %v979
        %v1127 = vpop.f32.mrf.mxu0
        %v1128 = vadd.f32 %v1001, %v1127
        %v1129 = vpop.f32.mrf.mxu0
        %v1130 = vadd.f32 %v1001, %v1129
        %1131 = vmatmul.bf16.gmra.mxu0 %v980
        %v1132 = vpop.f32.mrf.mxu0
        %v1133 = vadd.f32 %v1001, %v1132
        %v1134 = vpop.f32.mrf.mxu0
        %v1135 = vadd.f32 %v1001, %v1134
        %1136 = vmatmul.bf16.gmra.mxu0 %v981
        %v1137 = vpop.f32.mrf.mxu0
        %v1138 = vadd.f32 %v1001, %v1137
        %v1139 = vpop.f32.mrf.mxu0
        %v1140 = vadd.f32 %v1001, %v1139
        %1141 = vdwg.mxu0
        %v1142 = vpack.c.bf16 %v1094, %v1094
        %v1143 = vpack.c.bf16 %v1096, %v1096
        %v1144 = vpack.c.bf16 %v1099, %v1099
        %v1145 = vpack.c.bf16 %v1101, %v1101
        %v1146 = vpack.c.bf16 %v1104, %v1104
        %v1147 = vpack.c.bf16 %v1106, %v1106
        %v1148 = vpack.c.bf16 %v1109, %v1109
        %v1149 = vpack.c.bf16 %v1111, %v1111
        %v1150 = vpack.c.bf16 %v1123, %v1123
        %v1151 = vpack.c.bf16 %v1125, %v1125
        %v1152 = vpack.c.bf16 %v1128, %v1128
        %v1153 = vpack.c.bf16 %v1130, %v1130
        %v1154 = vpack.c.bf16 %v1133, %v1133
        %v1155 = vpack.c.bf16 %v1135, %v1135
        %v1156 = vpack.c.bf16 %v1138, %v1138
        %v1157 = vpack.c.bf16 %v1140, %v1140
        %v1160 = vunpack.c.l.b16 %v976
        %v1161 = vunpack.c.l.b16 %v977
        %v1162 = vpack.c.b16 %v1161, %v1160
        %v1171 = vunpack.c.l.b16 %v1142
        %v1172 = vunpack.c.l.b16 %v1143
        %v1173 = vunpack.c.l.b16 %v1144
        %v1174 = vunpack.c.l.b16 %v1145
        %v1175 = vunpack.c.l.b16 %v1146
        %v1176 = vunpack.c.l.b16 %v1147
        %v1177 = vunpack.c.l.b16 %v1148
        %v1178 = vunpack.c.l.b16 %v1149
        %v1179 = vpack.c.b16 %v1172, %v1171
        %v1180 = vpack.c.b16 %v1174, %v1173
        %v1181 = vpack.c.b16 %v1176, %v1175
        %v1182 = vpack.c.b16 %v1178, %v1177
        %vm1183 = vcmask 261120
        %v1185 = vsel %vm1183, %v1162, 0
        %v1188 = vsel %vm1183, %v1179, 0
        %v1191 = vsel %vm1183, %v1180, 0
        %v1194 = vsel %vm1183, %v1181, 0
        %v1197 = vsel %vm1183, %v1182, 0
        %1199 = vmatpush.bf16.xpose.msra.mxu0 0
        %1200 = vmatpush.bf16.xpose.msra.mxu0 0
        %1201 = vmatpush.bf16.xpose.msra.mxu0 0
        %1202 = vmatpush.bf16.xpose.msra.mxu0 0
        %1203 = vmatpush.bf16.xpose.msra.mxu0 %v1197
        %1204 = vmatpush.bf16.xpose.msra.mxu0 %v1194
        %1205 = vmatpush.bf16.xpose.msra.mxu0 %v1191
        %1206 = vmatpush.bf16.xpose.msra.mxu0 %v1188
        %1207 = vmatmul.bf16.gmra.mxu0 %v1185
        %v1208 = vpop.f32.mrf.mxu0
        %v1209 = vadd.f32 0.0, %v1208
        %v1210 = vpop.f32.mrf.mxu0
        %v1211 = vadd.f32 0.0, %v1210
        %1212 = vdwg.mxu0
        %vm1213 = vcmask 523264
        %1214 = vst.msk [vmem:[#allocation5] sm:$0xff] %vm1213, %v1209
        %1215 = vst.msk [vmem:[#allocation5 + $0x8] sm:$0xff] %vm1213, %v1211
        %1216 = vrot.lane.b32.xlu0 %v1162, 96
        %v1217 = vpop.permute.xlu0 %1216
        %1218 = vrot.lane.b32.xlu0 %v1179, 96
        %v1219 = vpop.permute.xlu0 %1218
        %1220 = vrot.lane.b32.xlu0 %v1180, 96
        %v1221 = vpop.permute.xlu0 %1220
        %1222 = vrot.lane.b32.xlu0 %v1181, 96
        %v1223 = vpop.permute.xlu0 %1222
        %1224 = vrot.lane.b32.xlu0 %v1182, 96
        %v1225 = vpop.permute.xlu0 %1224
        %v1227 = vsel %vm1183, %v1217, 0
        %v1230 = vsel %vm1183, %v1219, 0
        %v1233 = vsel %vm1183, %v1221, 0
        %v1236 = vsel %vm1183, %v1223, 0
        %v1239 = vsel %vm1183, %v1225, 0
        %1241 = vmatpush.bf16.xpose.msra.mxu0 0
        %1242 = vmatpush.bf16.xpose.msra.mxu0 0
        %1243 = vmatpush.bf16.xpose.msra.mxu0 0
        %1244 = vmatpush.bf16.xpose.msra.mxu0 0
        %1245 = vmatpush.bf16.xpose.msra.mxu0 %v1239
        %1246 = vmatpush.bf16.xpose.msra.mxu0 %v1236
        %1247 = vmatpush.bf16.xpose.msra.mxu0 %v1233
        %1248 = vmatpush.bf16.xpose.msra.mxu0 %v1230
        %1249 = vmatmul.bf16.gmra.mxu0 %v1227
        %v1250 = vpop.f32.mrf.mxu0
        %v1251 = vadd.f32 0.0, %v1250
        %v1252 = vpop.f32.mrf.mxu0
        %v1253 = vadd.f32 0.0, %v1252
        %1254 = vdwg.mxu0
        %1255 = vst.msk [vmem:[#allocation5 + $0x10] sm:$0xff] %vm1213, %v1251
        %1256 = vst.msk [vmem:[#allocation5 + $0x18] sm:$0xff] %vm1213, %v1253
        %1257 = vrot.lane.b32.xlu0 %v1162, 64
        %v1258 = vpop.permute.xlu0 %1257
        %1259 = vrot.lane.b32.xlu0 %v1179, 64
        %v1260 = vpop.permute.xlu0 %1259
        %1261 = vrot.lane.b32.xlu0 %v1180, 64
        %v1262 = vpop.permute.xlu0 %1261
        %1263 = vrot.lane.b32.xlu0 %v1181, 64
        %v1264 = vpop.permute.xlu0 %1263
        %1265 = vrot.lane.b32.xlu0 %v1182, 64
        %v1266 = vpop.permute.xlu0 %1265
        %v1268 = vsel %vm1183, %v1258, 0
        %v1271 = vsel %vm1183, %v1260, 0
        %v1274 = vsel %vm1183, %v1262, 0
        %v1277 = vsel %vm1183, %v1264, 0
        %v1280 = vsel %vm1183, %v1266, 0
        %1282 = vmatpush.bf16.xpose.msra.mxu0 0
        %1283 = vmatpush.bf16.xpose.msra.mxu0 0
        %1284 = vmatpush.bf16.xpose.msra.mxu0 0
        %1285 = vmatpush.bf16.xpose.msra.mxu0 0
        %1286 = vmatpush.bf16.xpose.msra.mxu0 %v1280
        %1287 = vmatpush.bf16.xpose.msra.mxu0 %v1277
        %1288 = vmatpush.bf16.xpose.msra.mxu0 %v1274
        %1289 = vmatpush.bf16.xpose.msra.mxu0 %v1271
        %1290 = vmatmul.bf16.gmra.mxu0 %v1268
        %v1291 = vpop.f32.mrf.mxu0
        %v1292 = vadd.f32 0.0, %v1291
        %v1293 = vpop.f32.mrf.mxu0
        %v1294 = vadd.f32 0.0, %v1293
        %1295 = vdwg.mxu0
        %1296 = vst.msk [vmem:[#allocation5 + $0x20] sm:$0xff] %vm1213, %v1292
        %1297 = vst.msk [vmem:[#allocation5 + $0x28] sm:$0xff] %vm1213, %v1294
        %1298 = vrot.lane.b32.xlu0 %v1162, 32
        %v1299 = vpop.permute.xlu0 %1298
        %1300 = vrot.lane.b32.xlu0 %v1179, 32
        %v1301 = vpop.permute.xlu0 %1300
        %1302 = vrot.lane.b32.xlu0 %v1180, 32
        %v1303 = vpop.permute.xlu0 %1302
        %1304 = vrot.lane.b32.xlu0 %v1181, 32
        %v1305 = vpop.permute.xlu0 %1304
        %1306 = vrot.lane.b32.xlu0 %v1182, 32
        %v1307 = vpop.permute.xlu0 %1306
        %v1309 = vsel %vm1183, %v1299, 0
        %v1312 = vsel %vm1183, %v1301, 0
        %v1315 = vsel %vm1183, %v1303, 0
        %v1318 = vsel %vm1183, %v1305, 0
        %v1321 = vsel %vm1183, %v1307, 0
        %1323 = vmatpush.bf16.xpose.msra.mxu0 0
        %1324 = vmatpush.bf16.xpose.msra.mxu0 0
        %1325 = vmatpush.bf16.xpose.msra.mxu0 0
        %1326 = vmatpush.bf16.xpose.msra.mxu0 0
        %1327 = vmatpush.bf16.xpose.msra.mxu0 %v1321
        %1328 = vmatpush.bf16.xpose.msra.mxu0 %v1318
        %1329 = vmatpush.bf16.xpose.msra.mxu0 %v1315
        %1330 = vmatpush.bf16.xpose.msra.mxu0 %v1312
        %1331 = vmatmul.bf16.gmra.mxu0 %v1309
        %v1332 = vpop.f32.mrf.mxu0
        %v1333 = vadd.f32 0.0, %v1332
        %v1334 = vpop.f32.mrf.mxu0
        %v1335 = vadd.f32 0.0, %v1334
        %1336 = vdwg.mxu0
        %1337 = vst.msk [vmem:[#allocation5 + $0x30] sm:$0xff] %vm1213, %v1333
        %1338 = vst.msk [vmem:[#allocation5 + $0x38] sm:$0xff] %vm1213, %v1335
        %v1339 = vld [vmem:[#allocation5] sm:$0xff]
        %v1340 = vld [vmem:[#allocation5 + $0x8] sm:$0xff]
        %v1341 = vld [vmem:[#allocation5 + $0x10] sm:$0xff]
        %v1342 = vld [vmem:[#allocation5 + $0x18] sm:$0xff]
        %v1343 = vld [vmem:[#allocation5 + $0x20] sm:$0xff]
        %v1344 = vld [vmem:[#allocation5 + $0x28] sm:$0xff]
        %v1345 = vld [vmem:[#allocation5 + $0x30] sm:$0xff]
        %v1346 = vld [vmem:[#allocation5 + $0x38] sm:$0xff]
        %v1347 = vsel %vm1213, %v1339, -inf
        %1348 = vmax.xlane.f32.xlu0 %v1347
        %v1349 = vpop.xlane.xlu0 %1348
        %v1350 = vsel %vm1213, %v1340, -inf
        %1351 = vmax.xlane.f32.xlu0 %v1350
        %v1352 = vpop.xlane.xlu0 %1351
        %v1353 = vsel %vm1213, %v1341, -inf
        %1354 = vmax.xlane.f32.xlu0 %v1353
        %v1355 = vpop.xlane.xlu0 %1354
        %v1356 = vsel %vm1213, %v1342, -inf
        %1357 = vmax.xlane.f32.xlu0 %v1356
        %v1358 = vpop.xlane.xlu0 %1357
        %v1359 = vsel %vm1213, %v1343, -inf
        %1360 = vmax.xlane.f32.xlu0 %v1359
        %v1361 = vpop.xlane.xlu0 %1360
        %v1362 = vsel %vm1213, %v1344, -inf
        %1363 = vmax.xlane.f32.xlu0 %v1362
        %v1364 = vpop.xlane.xlu0 %1363
        %v1365 = vsel %vm1213, %v1345, -inf
        %1366 = vmax.xlane.f32.xlu0 %v1365
        %v1367 = vpop.xlane.xlu0 %1366
        %v1368 = vsel %vm1213, %v1346, -inf
        %1369 = vmax.xlane.f32.xlu0 %v1368
        %v1370 = vpop.xlane.xlu0 %1369
        %v1371 = vsub.f32 %v1339, %v1349
        %v1372 = vsub.f32 %v1340, %v1352
        %v1373 = vsub.f32 %v1341, %v1355
        %v1374 = vsub.f32 %v1342, %v1358
        %v1375 = vsub.f32 %v1343, %v1361
        %v1376 = vsub.f32 %v1344, %v1364
        %v1377 = vsub.f32 %v1345, %v1367
        %v1378 = vsub.f32 %v1346, %v1370
        %v1379 = vmul.f32 %v1371, 1.442695
        %v1380 = vpow.pop %v1379
        %v1381 = vmul.f32 %v1372, 1.442695
        %v1382 = vpow.pop %v1381
        %v1383 = vmul.f32 %v1373, 1.442695
        %v1384 = vpow.pop %v1383
        %v1385 = vmul.f32 %v1374, 1.442695
        %v1386 = vpow.pop %v1385
        %v1387 = vmul.f32 %v1375, 1.442695
        %v1388 = vpow.pop %v1387
        %v1389 = vmul.f32 %v1376, 1.442695
        %v1390 = vpow.pop %v1389
        %v1391 = vmul.f32 %v1377, 1.442695
        %v1392 = vpow.pop %v1391
        %v1393 = vmul.f32 %v1378, 1.442695
        %v1394 = vpow.pop %v1393
        %v1395 = vsel %vm1213, %v1380, 0.0
        %1396 = vadd.xlane.f32.xlu0 %v1395
        %v1397 = vpop.xlane.xlu0 %1396
        %v1398 = vsel %vm1213, %v1382, 0.0
        %1399 = vadd.xlane.f32.xlu0 %v1398
        %v1400 = vpop.xlane.xlu0 %1399
        %v1401 = vsel %vm1213, %v1384, 0.0
        %1402 = vadd.xlane.f32.xlu0 %v1401
        %v1403 = vpop.xlane.xlu0 %1402
        %v1404 = vsel %vm1213, %v1386, 0.0
        %1405 = vadd.xlane.f32.xlu0 %v1404
        %v1406 = vpop.xlane.xlu0 %1405
        %v1407 = vsel %vm1213, %v1388, 0.0
        %1408 = vadd.xlane.f32.xlu0 %v1407
        %v1409 = vpop.xlane.xlu0 %1408
        %v1410 = vsel %vm1213, %v1390, 0.0
        %1411 = vadd.xlane.f32.xlu0 %v1410
        %v1412 = vpop.xlane.xlu0 %1411
        %v1413 = vsel %vm1213, %v1392, 0.0
        %1414 = vadd.xlane.f32.xlu0 %v1413
        %v1415 = vpop.xlane.xlu0 %1414
        %v1416 = vsel %vm1213, %v1394, 0.0
        %1417 = vadd.xlane.f32.xlu0 %v1416
        %v1418 = vpop.xlane.xlu0 %1417
        %v1419 = vrcp.pop %v1397
        %v1420 = vmul.f32 %v1397, %v1419
        %v1421 = vsub.f32 1.0, %v1420
        %v1422 = vmul.f32 %v1419, %v1421
        %v1423 = vadd.f32 %v1419, %v1422
        %vm1424 = vweird.f32 %v1397
        %vm1425 = vweird.f32 %v1419
        %vm1426 = vmor %vm1424, %vm1425
        %v1427 = vsel %vm1426, %v1419, %v1423
        %v1428 = vand.u32 2147483647, %v1397
        %vm1429 = vcmp.eq.f32.partialorder %v1428, 8.507059e+37
        %v1430 = vand.u32 %v1397, 2147483648
        %v1431 = vor.u32 1.1754944e-38, %v1430
        %v1432 = vsel %vm1429, %v1431, %v1427
        %v1433 = vrcp.pop %v1400
        %v1434 = vmul.f32 %v1400, %v1433
        %v1435 = vsub.f32 1.0, %v1434
        %v1436 = vmul.f32 %v1433, %v1435
        %v1437 = vadd.f32 %v1433, %v1436
        %vm1438 = vweird.f32 %v1400
        %vm1439 = vweird.f32 %v1433
        %vm1440 = vmor %vm1438, %vm1439
        %v1441 = vsel %vm1440, %v1433, %v1437
        %v1442 = vand.u32 2147483647, %v1400
        %vm1443 = vcmp.eq.f32.partialorder %v1442, 8.507059e+37
        %v1444 = vand.u32 %v1400, 2147483648
        %v1445 = vor.u32 1.1754944e-38, %v1444
        %v1446 = vsel %vm1443, %v1445, %v1441
        %v1447 = vrcp.pop %v1403
        %v1448 = vmul.f32 %v1403, %v1447
        %v1449 = vsub.f32 1.0, %v1448
        %v1450 = vmul.f32 %v1447, %v1449
        %v1451 = vadd.f32 %v1447, %v1450
        %vm1452 = vweird.f32 %v1403
        %vm1453 = vweird.f32 %v1447
        %vm1454 = vmor %vm1452, %vm1453
        %v1455 = vsel %vm1454, %v1447, %v1451
        %v1456 = vand.u32 2147483647, %v1403
        %vm1457 = vcmp.eq.f32.partialorder %v1456, 8.507059e+37
        %v1458 = vand.u32 %v1403, 2147483648
        %v1459 = vor.u32 1.1754944e-38, %v1458
        %v1460 = vsel %vm1457, %v1459, %v1455
        %v1461 = vrcp.pop %v1406
        %v1462 = vmul.f32 %v1406, %v1461
        %v1463 = vsub.f32 1.0, %v1462
        %v1464 = vmul.f32 %v1461, %v1463
        %v1465 = vadd.f32 %v1461, %v1464
        %vm1466 = vweird.f32 %v1406
        %vm1467 = vweird.f32 %v1461
        %vm1468 = vmor %vm1466, %vm1467
        %v1469 = vsel %vm1468, %v1461, %v1465
        %v1470 = vand.u32 2147483647, %v1406
        %vm1471 = vcmp.eq.f32.partialorder %v1470, 8.507059e+37
        %v1472 = vand.u32 %v1406, 2147483648
        %v1473 = vor.u32 1.1754944e-38, %v1472
        %v1474 = vsel %vm1471, %v1473, %v1469
        %v1475 = vrcp.pop %v1409
        %v1476 = vmul.f32 %v1409, %v1475
        %v1477 = vsub.f32 1.0, %v1476
        %v1478 = vmul.f32 %v1475, %v1477
        %v1479 = vadd.f32 %v1475, %v1478
        %vm1480 = vweird.f32 %v1409
        %vm1481 = vweird.f32 %v1475
        %vm1482 = vmor %vm1480, %vm1481
        %v1483 = vsel %vm1482, %v1475, %v1479
        %v1484 = vand.u32 2147483647, %v1409
        %vm1485 = vcmp.eq.f32.partialorder %v1484, 8.507059e+37
        %v1486 = vand.u32 %v1409, 2147483648
        %v1487 = vor.u32 1.1754944e-38, %v1486
        %v1488 = vsel %vm1485, %v1487, %v1483
        %v1489 = vrcp.pop %v1412
        %v1490 = vmul.f32 %v1412, %v1489
        %v1491 = vsub.f32 1.0, %v1490
        %v1492 = vmul.f32 %v1489, %v1491
        %v1493 = vadd.f32 %v1489, %v1492
        %vm1494 = vweird.f32 %v1412
        %vm1495 = vweird.f32 %v1489
        %vm1496 = vmor %vm1494, %vm1495
        %v1497 = vsel %vm1496, %v1489, %v1493
        %v1498 = vand.u32 2147483647, %v1412
        %vm1499 = vcmp.eq.f32.partialorder %v1498, 8.507059e+37
        %v1500 = vand.u32 %v1412, 2147483648
        %v1501 = vor.u32 1.1754944e-38, %v1500
        %v1502 = vsel %vm1499, %v1501, %v1497
        %v1503 = vrcp.pop %v1415
        %v1504 = vmul.f32 %v1415, %v1503
        %v1505 = vsub.f32 1.0, %v1504
        %v1506 = vmul.f32 %v1503, %v1505
        %v1507 = vadd.f32 %v1503, %v1506
        %vm1508 = vweird.f32 %v1415
        %vm1509 = vweird.f32 %v1503
        %vm1510 = vmor %vm1508, %vm1509
        %v1511 = vsel %vm1510, %v1503, %v1507
        %v1512 = vand.u32 2147483647, %v1415
        %vm1513 = vcmp.eq.f32.partialorder %v1512, 8.507059e+37
        %v1514 = vand.u32 %v1415, 2147483648
        %v1515 = vor.u32 1.1754944e-38, %v1514
        %v1516 = vsel %vm1513, %v1515, %v1511
        %v1517 = vrcp.pop %v1418
        %v1518 = vmul.f32 %v1418, %v1517
        %v1519 = vsub.f32 1.0, %v1518
        %v1520 = vmul.f32 %v1517, %v1519
        %v1521 = vadd.f32 %v1517, %v1520
        %vm1522 = vweird.f32 %v1418
        %vm1523 = vweird.f32 %v1517
        %vm1524 = vmor %vm1522, %vm1523
        %v1525 = vsel %vm1524, %v1517, %v1521
        %v1526 = vand.u32 2147483647, %v1418
        %vm1527 = vcmp.eq.f32.partialorder %v1526, 8.507059e+37
        %v1528 = vand.u32 %v1418, 2147483648
        %v1529 = vor.u32 1.1754944e-38, %v1528
        %v1530 = vsel %vm1527, %v1529, %v1525
        %v1531 = vmul.f32 %v1380, %v1432
        %v1532 = vmul.f32 %v1382, %v1446
        %v1533 = vmul.f32 %v1384, %v1460
        %v1534 = vmul.f32 %v1386, %v1474
        %v1535 = vmul.f32 %v1388, %v1488
        %v1536 = vmul.f32 %v1390, %v1502
        %v1537 = vmul.f32 %v1392, %v1516
        %v1538 = vmul.f32 %v1394, %v1530
        %v1539 = vpack.c.bf16 %v1531, %v1531
        %v1540 = vpack.c.bf16 %v1532, %v1532
        %v1541 = vpack.c.bf16 %v1533, %v1533
        %v1542 = vpack.c.bf16 %v1534, %v1534
        %v1543 = vpack.c.bf16 %v1535, %v1535
        %v1544 = vpack.c.bf16 %v1536, %v1536
        %v1545 = vpack.c.bf16 %v1537, %v1537
        %v1546 = vpack.c.bf16 %v1538, %v1538
        %v1549 = vunpack.c.l.b16 %v1539
        %v1550 = vunpack.c.l.b16 %v1540
        %v1551 = vpack.c.b16 %v1550, %v1549
        %v1560 = vunpack.c.l.b16 %v1150
        %v1561 = vunpack.c.l.b16 %v1151
        %v1562 = vunpack.c.l.b16 %v1152
        %v1563 = vunpack.c.l.b16 %v1153
        %v1564 = vunpack.c.l.b16 %v1154
        %v1565 = vunpack.c.l.b16 %v1155
        %v1566 = vunpack.c.l.b16 %v1156
        %v1567 = vunpack.c.l.b16 %v1157
        %v1568 = vpack.c.b16 %v1561, %v1560
        %v1569 = vpack.c.b16 %v1563, %v1562
        %v1570 = vpack.c.b16 %v1565, %v1564
        %v1571 = vpack.c.b16 %v1567, %v1566
        %v1577 = vsel %vm1213, %v1551, 0
        %1579 = vmatpush.bf16.msra.mxu0 0
        %1580 = vmatpush.bf16.msra.mxu0 0
        %1581 = vmatpush.bf16.msra.mxu0 0
        %1582 = vmatpush.bf16.msra.mxu0 0
        %1583 = vmatpush.bf16.msra.mxu0 %v1571
        %1584 = vmatpush.bf16.msra.mxu0 %v1570
        %1585 = vmatpush.bf16.msra.mxu0 %v1569
        %1586 = vmatpush.bf16.msra.mxu0 %v1568
        %1587 = vmatmul.bf16.gmra.mxu0 %v1577
        %v1588 = vpop.f32.mrf.mxu0
        %v1589 = vadd.f32 0.0, %v1588
        %v1590 = vpop.f32.mrf.mxu0
        %v1591 = vadd.f32 0.0, %v1590
        %1592 = vdwg.mxu0
        %v1595 = vunpack.c.l.b16 %v1541
        %v1596 = vunpack.c.l.b16 %v1542
        %v1597 = vpack.c.b16 %v1596, %v1595
        %1598 = vrot.lane.b32.xlu0 %v1568, 96
        %v1599 = vpop.permute.xlu0 %1598
        %1600 = vrot.lane.b32.xlu0 %v1569, 96
        %v1601 = vpop.permute.xlu0 %1600
        %1602 = vrot.lane.b32.xlu0 %v1570, 96
        %v1603 = vpop.permute.xlu0 %1602
        %1604 = vrot.lane.b32.xlu0 %v1571, 96
        %v1605 = vpop.permute.xlu0 %1604
        %v1611 = vsel %vm1213, %v1597, 0
        %1613 = vmatpush.bf16.msra.mxu0 0
        %1614 = vmatpush.bf16.msra.mxu0 0
        %1615 = vmatpush.bf16.msra.mxu0 0
        %1616 = vmatpush.bf16.msra.mxu0 0
        %1617 = vmatpush.bf16.msra.mxu0 %v1605
        %1618 = vmatpush.bf16.msra.mxu0 %v1603
        %1619 = vmatpush.bf16.msra.mxu0 %v1601
        %1620 = vmatpush.bf16.msra.mxu0 %v1599
        %1621 = vmatmul.bf16.gmra.mxu0 %v1611
        %v1622 = vpop.f32.mrf.mxu0
        %v1623 = vadd.f32 0.0, %v1622
        %v1624 = vpop.f32.mrf.mxu0
        %v1625 = vadd.f32 0.0, %v1624
        %1626 = vdwg.mxu0
        %v1629 = vunpack.c.l.b16 %v1543
        %v1630 = vunpack.c.l.b16 %v1544
        %v1631 = vpack.c.b16 %v1630, %v1629
        %1632 = vrot.lane.b32.xlu0 %v1568, 64
        %v1633 = vpop.permute.xlu0 %1632
        %1634 = vrot.lane.b32.xlu0 %v1569, 64
        %v1635 = vpop.permute.xlu0 %1634
        %1636 = vrot.lane.b32.xlu0 %v1570, 64
        %v1637 = vpop.permute.xlu0 %1636
        %1638 = vrot.lane.b32.xlu0 %v1571, 64
        %v1639 = vpop.permute.xlu0 %1638
        %v1645 = vsel %vm1213, %v1631, 0
        %1647 = vmatpush.bf16.msra.mxu0 0
        %1648 = vmatpush.bf16.msra.mxu0 0
        %1649 = vmatpush.bf16.msra.mxu0 0
        %1650 = vmatpush.bf16.msra.mxu0 0
        %1651 = vmatpush.bf16.msra.mxu0 %v1639
        %1652 = vmatpush.bf16.msra.mxu0 %v1637
        %1653 = vmatpush.bf16.msra.mxu0 %v1635
        %1654 = vmatpush.bf16.msra.mxu0 %v1633
        %1655 = vmatmul.bf16.gmra.mxu0 %v1645
        %v1656 = vpop.f32.mrf.mxu0
        %v1657 = vadd.f32 0.0, %v1656
        %v1658 = vpop.f32.mrf.mxu0
        %v1659 = vadd.f32 0.0, %v1658
        %1660 = vdwg.mxu0
        %v1663 = vunpack.c.l.b16 %v1545
        %v1664 = vunpack.c.l.b16 %v1546
        %v1665 = vpack.c.b16 %v1664, %v1663
        %1666 = vrot.lane.b32.xlu0 %v1568, 32
        %v1667 = vpop.permute.xlu0 %1666
        %1668 = vrot.lane.b32.xlu0 %v1569, 32
        %v1669 = vpop.permute.xlu0 %1668
        %1670 = vrot.lane.b32.xlu0 %v1570, 32
        %v1671 = vpop.permute.xlu0 %1670
        %1672 = vrot.lane.b32.xlu0 %v1571, 32
        %v1673 = vpop.permute.xlu0 %1672
        %v1679 = vsel %vm1213, %v1665, 0
        %1681 = vmatpush.bf16.msra.mxu0 0
        %1682 = vmatpush.bf16.msra.mxu0 0
        %1683 = vmatpush.bf16.msra.mxu0 0
        %1684 = vmatpush.bf16.msra.mxu0 0
        %1685 = vmatpush.bf16.msra.mxu0 %v1673
        %1686 = vmatpush.bf16.msra.mxu0 %v1671
        %1687 = vmatpush.bf16.msra.mxu0 %v1669
        %1688 = vmatpush.bf16.msra.mxu0 %v1667
        %1689 = vmatmul.bf16.gmra.mxu0 %v1679
        %v1690 = vpop.f32.mrf.mxu0
        %v1691 = vadd.f32 0.0, %v1690
        %v1692 = vpop.f32.mrf.mxu0
        %v1693 = vadd.f32 0.0, %v1692
        %1694 = vdwg.mxu0
        %1697 = vrot.lane.b32.xlu0 %v1623, 32
        %v1698 = vpop.permute.xlu0 %1697
        %1699 = vrot.lane.b32.xlu0 %v1625, 32
        %v1700 = vpop.permute.xlu0 %1699
        %1705 = vrot.lane.b32.xlu0 %v1657, 64
        %v1706 = vpop.permute.xlu0 %1705
        %1707 = vrot.lane.b32.xlu0 %v1659, 64
        %v1708 = vpop.permute.xlu0 %1707
        %1713 = vrot.lane.b32.xlu0 %v1691, 96
        %v1714 = vpop.permute.xlu0 %1713
        %1715 = vrot.lane.b32.xlu0 %v1693, 96
        %v1716 = vpop.permute.xlu0 %1715
        %v1719 = vsel %vm1183, %v1589, %v1698
        %v1720 = vsel %vm1183, %v1591, %v1700
        %v1721 = vsel %vm1213, %v1719, %v1706
        %v1722 = vsel %vm1213, %v1720, %v1708
        %vm1723 = vcmask 785408
        %v1724 = vsel %vm1723, %v1721, %v1714
        %v1725 = vsel %vm1723, %v1722, %v1716
        %v1726 = vpack.c.bf16 %v1725, %v1724
        %v1727 = vld [vmem:[%s10] sm:$0xf]
        %v1728 = vld [vmem:[%s10 + $0x4] sm:$0xf]
        %v1729 = vld [vmem:[%s10 + $0x8] sm:$0xf]
        %v1730 = vld [vmem:[%s10 + $0xc] sm:$0xf]
        %v1731 = vld [vmem:[%s10 + $0x10] sm:$0xf]
        %v1732 = vld [vmem:[%s10 + $0x14] sm:$0xf]
        %v1733 = vld [vmem:[%s10 + $0x18] sm:$0xf]
        %v1734 = vld [vmem:[%s10 + $0x1c] sm:$0xf]
        %v1735 = vld [vmem:[%s10 + $0x20] sm:$0xf]
        %v1736 = vld [vmem:[%s10 + $0x24] sm:$0xf]
        %v1737 = vld [vmem:[%s10 + $0x28] sm:$0xf]
        %v1738 = vld [vmem:[%s10 + $0x2c] sm:$0xf]
        %v1739 = vld [vmem:[%s10 + $0x30] sm:$0xf]
        %v1740 = vld [vmem:[%s10 + $0x34] sm:$0xf]
        %v1741 = vld [vmem:[%s10 + $0x38] sm:$0xf]
        %v1742 = vld [vmem:[%s10 + $0x3c] sm:$0xf]
        %v1743 = vld [vmem:[%s11] sm:$0x1]
        %v1745 = vperm.slane %v1743, 0
        %v1763 = vunpack.c.l.b16 %v1727
        %v1764 = vunpack.c.l.b16 %v1728
        %v1765 = vunpack.c.l.b16 %v1729
        %v1766 = vunpack.c.l.b16 %v1730
        %v1767 = vunpack.c.l.b16 %v1731
        %v1768 = vunpack.c.l.b16 %v1732
        %v1769 = vunpack.c.l.b16 %v1733
        %v1770 = vunpack.c.l.b16 %v1734
        %v1771 = vunpack.c.l.b16 %v1735
        %v1772 = vunpack.c.l.b16 %v1736
        %v1773 = vunpack.c.l.b16 %v1737
        %v1774 = vunpack.c.l.b16 %v1738
        %v1775 = vunpack.c.l.b16 %v1739
        %v1776 = vunpack.c.l.b16 %v1740
        %v1777 = vunpack.c.l.b16 %v1741
        %v1778 = vunpack.c.l.b16 %v1742
        %v1779 = vpack.c.b16 %v1764, %v1763
        %v1780 = vpack.c.b16 %v1766, %v1765
        %v1781 = vpack.c.b16 %v1768, %v1767
        %v1782 = vpack.c.b16 %v1770, %v1769
        %v1783 = vpack.c.b16 %v1772, %v1771
        %v1784 = vpack.c.b16 %v1774, %v1773
        %v1785 = vpack.c.b16 %v1776, %v1775
        %v1786 = vpack.c.b16 %v1778, %v1777
        %1795 = vmatpush.bf16.msra.mxu0 %v1786
        %1796 = vmatpush.bf16.msra.mxu0 %v1785
        %1797 = vmatpush.bf16.msra.mxu0 %v1784
        %1798 = vmatpush.bf16.msra.mxu0 %v1783
        %1799 = vmatpush.bf16.msra.mxu0 %v1782
        %1800 = vmatpush.bf16.msra.mxu0 %v1781
        %1801 = vmatpush.bf16.msra.mxu0 %v1780
        %1802 = vmatpush.bf16.msra.mxu0 %v1779
        %1803 = vmatmul.bf16.gmra.mxu0 %v1726
        %v1804 = vpop.f32.mrf.mxu0
        %v1805 = vadd.f32 %v1745, %v1804
        %v1806 = vpop.f32.mrf.mxu0
        %v1807 = vadd.f32 %v1745, %v1806
        %1808 = vdwg.mxu0
        %v1809 = vadd.f32 %v891, %v1805
        %v1810 = vadd.f32 %v892, %v1807
        %v1811 = vld [vmem:[%s12] sm:$0x1]
        %v1812 = vld [vmem:[%s13] sm:$0x1]
        %1813 = vadd.xlane.f32.xlu0 %v1809
        %v1814 = vpop.xlane.xlu0 %1813
        %1815 = vadd.xlane.f32.xlu0 %v1810
        %v1816 = vpop.xlane.xlu0 %1815
        %v1817 = vmul.f32 %v1814, %v690
        %v1818 = vmul.f32 %v1816, %v690
        %v1819 = vsub.f32 %v1809, %v1817
        %v1820 = vsub.f32 %v1810, %v1818
        %v1821 = vmul.f32 %v1819, %v1819
        %v1822 = vmul.f32 %v1820, %v1820
        %1823 = vadd.xlane.f32.xlu0 %v1821
        %v1824 = vpop.xlane.xlu0 %1823
        %1825 = vadd.xlane.f32.xlu0 %v1822
        %v1826 = vpop.xlane.xlu0 %1825
        %v1827 = vmul.f32 %v1824, %v690
        %v1828 = vmul.f32 %v1826, %v690
        %v1829 = vadd.f32 %v1827, 1e-05
        %v1830 = vadd.f32 %v1828, 1e-05
        %v1831 = vrsqrt.pop %v1829
        %v1832 = vmul.f32 %v1831, %v1829
        %v1833 = vmul.f32 %v1832, %v1831
        %v1834 = vmul.f32 0.5, %v1833
        %v1835 = vsub.f32 1.5, %v1834
        %v1836 = vmul.f32 %v1831, %v1835
        %vm1837 = vweird.f32 %v1829
        %vm1838 = vweird.f32 %v1831
        %vm1839 = vmor %vm1837, %vm1838
        %v1840 = vsel %vm1839, %v1831, %v1836
        %v1841 = vrsqrt.pop %v1830
        %v1842 = vmul.f32 %v1841, %v1830
        %v1843 = vmul.f32 %v1842, %v1841
        %v1844 = vmul.f32 0.5, %v1843
        %v1845 = vsub.f32 1.5, %v1844
        %v1846 = vmul.f32 %v1841, %v1845
        %vm1847 = vweird.f32 %v1830
        %vm1848 = vweird.f32 %v1841
        %vm1849 = vmor %vm1847, %vm1848
        %v1850 = vsel %vm1849, %v1841, %v1846
        %v1851 = vmul.f32 %v1819, %v1840
        %v1852 = vmul.f32 %v1820, %v1850
        %v1854 = vperm.slane %v1811, 0
        %v1856 = vmul.f32 %v1851, %v1854
        %v1857 = vmul.f32 %v1852, %v1854
        %v1859 = vperm.slane %v1812, 0
        %v1861 = vadd.f32 %v1856, %v1859
        %v1862 = vadd.f32 %v1857, %v1859
        %v1863 = vpack.c.bf16 %v1862, %v1861
        %v1864 = vld [vmem:[%s14] sm:$0xff]
        %v1865 = vld [vmem:[%s14 + $0x8] sm:$0xff]
        %v1866 = vld [vmem:[%s14 + $0x10] sm:$0xff]
        %v1867 = vld [vmem:[%s14 + $0x18] sm:$0xff]
        %v1868 = vld [vmem:[%s14 + $0x20] sm:$0xff]
        %v1869 = vld [vmem:[%s14 + $0x28] sm:$0xff]
        %v1870 = vld [vmem:[%s14 + $0x30] sm:$0xff]
        %v1871 = vld [vmem:[%s14 + $0x38] sm:$0xff]
        %v1872 = vld [vmem:[%s14 + $0x40] sm:$0xff]
        %v1873 = vld [vmem:[%s14 + $0x48] sm:$0xff]
        %v1874 = vld [vmem:[%s14 + $0x50] sm:$0xff]
        %v1875 = vld [vmem:[%s14 + $0x58] sm:$0xff]
        %v1876 = vld [vmem:[%s14 + $0x60] sm:$0xff]
        %v1877 = vld [vmem:[%s14 + $0x68] sm:$0xff]
        %v1878 = vld [vmem:[%s14 + $0x70] sm:$0xff]
        %v1879 = vld [vmem:[%s14 + $0x78] sm:$0xff]
        %v1880 = vld [vmem:[%s15] sm:$0x3]
        %v1882 = vperm.slane %v1880, 0
        %v1883 = vperm.slane %v1880, 1
        %v1902 = vunpack.c.l.b16 %v1864
        %v1903 = vunpack.c.h.b16 %v1864
        %v1904 = vunpack.c.l.b16 %v1865
        %v1905 = vunpack.c.h.b16 %v1865
        %v1906 = vunpack.c.l.b16 %v1866
        %v1907 = vunpack.c.h.b16 %v1866
        %v1908 = vunpack.c.l.b16 %v1867
        %v1909 = vunpack.c.h.b16 %v1867
        %v1910 = vunpack.c.l.b16 %v1868
        %v1911 = vunpack.c.h.b16 %v1868
        %v1912 = vunpack.c.l.b16 %v1869
        %v1913 = vunpack.c.h.b16 %v1869
        %v1914 = vunpack.c.l.b16 %v1870
        %v1915 = vunpack.c.h.b16 %v1870
        %v1916 = vunpack.c.l.b16 %v1871
        %v1917 = vunpack.c.h.b16 %v1871
        %v1918 = vunpack.c.l.b16 %v1872
        %v1919 = vunpack.c.h.b16 %v1872
        %v1920 = vunpack.c.l.b16 %v1873
        %v1921 = vunpack.c.h.b16 %v1873
        %v1922 = vunpack.c.l.b16 %v1874
        %v1923 = vunpack.c.h.b16 %v1874
        %v1924 = vunpack.c.l.b16 %v1875
        %v1925 = vunpack.c.h.b16 %v1875
        %v1926 = vunpack.c.l.b16 %v1876
        %v1927 = vunpack.c.h.b16 %v1876
        %v1928 = vunpack.c.l.b16 %v1877
        %v1929 = vunpack.c.h.b16 %v1877
        %v1930 = vunpack.c.l.b16 %v1878
        %v1931 = vunpack.c.h.b16 %v1878
        %v1932 = vunpack.c.l.b16 %v1879
        %v1933 = vunpack.c.h.b16 %v1879
        %v1934 = vpack.c.b16 %v1904, %v1902
        %v1935 = vpack.c.b16 %v1905, %v1903
        %v1936 = vpack.c.b16 %v1908, %v1906
        %v1937 = vpack.c.b16 %v1909, %v1907
        %v1938 = vpack.c.b16 %v1912, %v1910
        %v1939 = vpack.c.b16 %v1913, %v1911
        %v1940 = vpack.c.b16 %v1916, %v1914
        %v1941 = vpack.c.b16 %v1917, %v1915
        %v1942 = vpack.c.b16 %v1920, %v1918
        %v1943 = vpack.c.b16 %v1921, %v1919
        %v1944 = vpack.c.b16 %v1924, %v1922
        %v1945 = vpack.c.b16 %v1925, %v1923
        %v1946 = vpack.c.b16 %v1928, %v1926
        %v1947 = vpack.c.b16 %v1929, %v1927
        %v1948 = vpack.c.b16 %v1932, %v1930
        %v1949 = vpack.c.b16 %v1933, %v1931
        %1966 = vmatpush.bf16.msra.mxu0 %v1948
        %1967 = vmatpush.bf16.msra.mxu0 %v1946
        %1968 = vmatpush.bf16.msra.mxu0 %v1944
        %1969 = vmatpush.bf16.msra.mxu0 %v1942
        %1970 = vmatpush.bf16.msra.mxu0 %v1940
        %1971 = vmatpush.bf16.msra.mxu0 %v1938
        %1972 = vmatpush.bf16.msra.mxu0 %v1936
        %1973 = vmatpush.bf16.msra.mxu0 %v1934
        %1974 = vmatmul.bf16.gmra.mxu0 %v1863
        %v1975 = vpop.f32.mrf.mxu0
        %v1976 = vadd.f32 %v1882, %v1975
        %v1977 = vpop.f32.mrf.mxu0
        %v1978 = vadd.f32 %v1882, %v1977
        %1979 = vdwg.mxu0
        %1980 = vmatpush.bf16.msra.mxu0 %v1949
        %1981 = vmatpush.bf16.msra.mxu0 %v1947
        %1982 = vmatpush.bf16.msra.mxu0 %v1945
        %1983 = vmatpush.bf16.msra.mxu0 %v1943
        %1984 = vmatpush.bf16.msra.mxu0 %v1941
        %1985 = vmatpush.bf16.msra.mxu0 %v1939
        %1986 = vmatpush.bf16.msra.mxu0 %v1937
        %1987 = vmatpush.bf16.msra.mxu0 %v1935
        %1988 = vmatmul.bf16.gmra.mxu0 %v1863
        %v1989 = vpop.f32.mrf.mxu0
        %v1990 = vadd.f32 %v1883, %v1989
        %v1991 = vpop.f32.mrf.mxu0
        %v1992 = vadd.f32 %v1883, %v1991
        %1993 = vdwg.mxu0
        %v1994 = vmul.f32 %v1976, %v1976
        %v1995 = vmul.f32 %v1990, %v1990
        %v1996 = vmul.f32 %v1978, %v1978
        %v1997 = vmul.f32 %v1992, %v1992
        %v1998 = vmul.f32 %v1976, %v1994
        %v1999 = vmul.f32 %v1990, %v1995
        %v2000 = vmul.f32 %v1978, %v1996
        %v2001 = vmul.f32 %v1992, %v1997
        %v2002 = vmul.f32 %v1998, 0.044715
        %v2003 = vmul.f32 %v1999, 0.044715
        %v2004 = vmul.f32 %v2000, 0.044715
        %v2005 = vmul.f32 %v2001, 0.044715
        %v2006 = vadd.f32 %v1976, %v2002
        %v2007 = vadd.f32 %v1990, %v2003
        %v2008 = vadd.f32 %v1978, %v2004
        %v2009 = vadd.f32 %v1992, %v2005
        %v2010 = vmul.f32 %v2006, 0.7978846
        %v2011 = vmul.f32 %v2007, 0.7978846
        %v2012 = vmul.f32 %v2008, 0.7978846
        %v2013 = vmul.f32 %v2009, 0.7978846
        %v2014 = vtanh.pop %v2010
        %v2015 = vtanh.pop %v2011
        %v2016 = vtanh.pop %v2012
        %v2017 = vtanh.pop %v2013
        %v2018 = vadd.f32 %v2014, 1.0
        %v2019 = vadd.f32 %v2015, 1.0
        %v2020 = vadd.f32 %v2016, 1.0
        %v2021 = vadd.f32 %v2017, 1.0
        %v2022 = vmul.f32 %v2018, 0.5
        %v2023 = vmul.f32 %v2019, 0.5
        %v2024 = vmul.f32 %v2020, 0.5
        %v2025 = vmul.f32 %v2021, 0.5
        %v2026 = vmul.f32 %v1976, %v2022
        %v2027 = vmul.f32 %v1990, %v2023
        %v2028 = vmul.f32 %v1978, %v2024
        %v2029 = vmul.f32 %v1992, %v2025
        %v2030 = vpack.c.bf16 %v2028, %v2026
        %v2031 = vpack.c.bf16 %v2029, %v2027
        %v2032 = vld [vmem:[%s16] sm:$0xf]
        %v2033 = vld [vmem:[%s16 + $0x4] sm:$0xf]
        %v2034 = vld [vmem:[%s16 + $0x8] sm:$0xf]
        %v2035 = vld [vmem:[%s16 + $0xc] sm:$0xf]
        %v2036 = vld [vmem:[%s16 + $0x10] sm:$0xf]
        %v2037 = vld [vmem:[%s16 + $0x14] sm:$0xf]
        %v2038 = vld [vmem:[%s16 + $0x18] sm:$0xf]
        %v2039 = vld [vmem:[%s16 + $0x1c] sm:$0xf]
        %v2040 = vld [vmem:[%s16 + $0x20] sm:$0xf]
        %v2041 = vld [vmem:[%s16 + $0x24] sm:$0xf]
        %v2042 = vld [vmem:[%s16 + $0x28] sm:$0xf]
        %v2043 = vld [vmem:[%s16 + $0x2c] sm:$0xf]
        %v2044 = vld [vmem:[%s16 + $0x30] sm:$0xf]
        %v2045 = vld [vmem:[%s16 + $0x34] sm:$0xf]
        %v2046 = vld [vmem:[%s16 + $0x38] sm:$0xf]
        %v2047 = vld [vmem:[%s16 + $0x3c] sm:$0xf]
        %v2048 = vld [vmem:[%s16 + $0x40] sm:$0xf]
        %v2049 = vld [vmem:[%s16 + $0x44] sm:$0xf]
        %v2050 = vld [vmem:[%s16 + $0x48] sm:$0xf]
        %v2051 = vld [vmem:[%s16 + $0x4c] sm:$0xf]
        %v2052 = vld [vmem:[%s16 + $0x50] sm:$0xf]
        %v2053 = vld [vmem:[%s16 + $0x54] sm:$0xf]
        %v2054 = vld [vmem:[%s16 + $0x58] sm:$0xf]
        %v2055 = vld [vmem:[%s16 + $0x5c] sm:$0xf]
        %v2056 = vld [vmem:[%s16 + $0x60] sm:$0xf]
        %v2057 = vld [vmem:[%s16 + $0x64] sm:$0xf]
        %v2058 = vld [vmem:[%s16 + $0x68] sm:$0xf]
        %v2059 = vld [vmem:[%s16 + $0x6c] sm:$0xf]
        %v2060 = vld [vmem:[%s16 + $0x70] sm:$0xf]
        %v2061 = vld [vmem:[%s16 + $0x74] sm:$0xf]
        %v2062 = vld [vmem:[%s16 + $0x78] sm:$0xf]
        %v2063 = vld [vmem:[%s16 + $0x7c] sm:$0xf]
        %v2064 = vld [vmem:[%s17] sm:$0x1]
        %v2066 = vperm.slane %v2064, 0
        %v2100 = vunpack.c.l.b16 %v2032
        %v2101 = vunpack.c.l.b16 %v2033
        %v2102 = vunpack.c.l.b16 %v2034
        %v2103 = vunpack.c.l.b16 %v2035
        %v2104 = vunpack.c.l.b16 %v2036
        %v2105 = vunpack.c.l.b16 %v2037
        %v2106 = vunpack.c.l.b16 %v2038
        %v2107 = vunpack.c.l.b16 %v2039
        %v2108 = vunpack.c.l.b16 %v2040
        %v2109 = vunpack.c.l.b16 %v2041
        %v2110 = vunpack.c.l.b16 %v2042
        %v2111 = vunpack.c.l.b16 %v2043
        %v2112 = vunpack.c.l.b16 %v2044
        %v2113 = vunpack.c.l.b16 %v2045
        %v2114 = vunpack.c.l.b16 %v2046
        %v2115 = vunpack.c.l.b16 %v2047
        %v2116 = vunpack.c.l.b16 %v2048
        %v2117 = vunpack.c.l.b16 %v2049
        %v2118 = vunpack.c.l.b16 %v2050
        %v2119 = vunpack.c.l.b16 %v2051
        %v2120 = vunpack.c.l.b16 %v2052
        %v2121 = vunpack.c.l.b16 %v2053
        %v2122 = vunpack.c.l.b16 %v2054
        %v2123 = vunpack.c.l.b16 %v2055
        %v2124 = vunpack.c.l.b16 %v2056
        %v2125 = vunpack.c.l.b16 %v2057
        %v2126 = vunpack.c.l.b16 %v2058
        %v2127 = vunpack.c.l.b16 %v2059
        %v2128 = vunpack.c.l.b16 %v2060
        %v2129 = vunpack.c.l.b16 %v2061
        %v2130 = vunpack.c.l.b16 %v2062
        %v2131 = vunpack.c.l.b16 %v2063
        %v2132 = vpack.c.b16 %v2101, %v2100
        %v2133 = vpack.c.b16 %v2103, %v2102
        %v2134 = vpack.c.b16 %v2105, %v2104
        %v2135 = vpack.c.b16 %v2107, %v2106
        %v2136 = vpack.c.b16 %v2109, %v2108
        %v2137 = vpack.c.b16 %v2111, %v2110
        %v2138 = vpack.c.b16 %v2113, %v2112
        %v2139 = vpack.c.b16 %v2115, %v2114
        %v2140 = vpack.c.b16 %v2117, %v2116
        %v2141 = vpack.c.b16 %v2119, %v2118
        %v2142 = vpack.c.b16 %v2121, %v2120
        %v2143 = vpack.c.b16 %v2123, %v2122
        %v2144 = vpack.c.b16 %v2125, %v2124
        %v2145 = vpack.c.b16 %v2127, %v2126
        %v2146 = vpack.c.b16 %v2129, %v2128
        %v2147 = vpack.c.b16 %v2131, %v2130
        %2164 = vmatpush.bf16.msra.mxu0 %v2139
        %2165 = vmatpush.bf16.msra.mxu0 %v2138
        %2166 = vmatpush.bf16.msra.mxu0 %v2137
        %2167 = vmatpush.bf16.msra.mxu0 %v2136
        %2168 = vmatpush.bf16.msra.mxu0 %v2135
        %2169 = vmatpush.bf16.msra.mxu0 %v2134
        %2170 = vmatpush.bf16.msra.mxu0 %v2133
        %2171 = vmatpush.bf16.msra.mxu0 %v2132
        %2172 = vmatmul.bf16.gmra.mxu0 %v2030
        %v2173 = vpop.f32.mrf.mxu0
        %v2174 = vadd.f32 %v2066, %v2173
        %v2175 = vpop.f32.mrf.mxu0
        %v2176 = vadd.f32 %v2066, %v2175
        %2177 = vdwg.mxu0
        %2178 = vmatpush.bf16.msra.mxu0 %v2147
        %2179 = vmatpush.bf16.msra.mxu0 %v2146
        %2180 = vmatpush.bf16.msra.mxu0 %v2145
        %2181 = vmatpush.bf16.msra.mxu0 %v2144
        %2182 = vmatpush.bf16.msra.mxu0 %v2143
        %2183 = vmatpush.bf16.msra.mxu0 %v2142
        %2184 = vmatpush.bf16.msra.mxu0 %v2141
        %2185 = vmatpush.bf16.msra.mxu0 %v2140
        %2186 = vmatmul.bf16.gmra.mxu0 %v2031
        %v2187 = vpop.f32.mrf.mxu0
        %v2188 = vadd.f32 %v2174, %v2187
        %v2189 = vpop.f32.mrf.mxu0
        %v2190 = vadd.f32 %v2176, %v2189
        %2191 = vdwg.mxu0
        %v2192 = vadd.f32 %v1861, %v2188
        %v2193 = vadd.f32 %v1862, %v2190
        %2194 = vst [vmem:[%s550 + $0x8] sm:$0xff] %v2192
        %2195 = vst [vmem:[%s550 + $0x18] sm:$0xff] %v2193
        %s2196 = sand.u32 %s410, 1
        %s2197 = scalar_lea.sflag [#allocation9], %s2196
        %s2198 = sand.u32 %s410, 1
        %s2199 = smul.addr %s2198, 32
        %s2200 = scalar_lea.vmem [#allocation8], %s2199
        // Predicated region
        $region96: #{gdp_forward.1} parent=87 // pred_check
          %p2201 = pneg %p420
        $region97: #{gdp_forward.1} parent=87 // pred_check_branch
          %2203 = sbr.rel (%p2201) target = $region99
        $region98: #{gdp_forward.1} parent=87 // pred_region
          %2205 = vsyncadd %s2197, 0
          %s2206 = smul.addr %s40, 4
          %s2207 = smul.addr %s2206, 8
          %s2208 = scalar_lea.hbm %s18, %s2207
          %s2209 = sshll.u32 %s2200, 4
          %s2210 = int_to_ptr.vmem [resolvable:$true] %s2209
          %s2211 = sshll.u32 %s2208, 4
          %s2212 = int_to_ptr.hbm [resolvable:$true] %s2211
          %2217 = dma.vmem_to_hbm [thread:$0]  %s2210, 512, %s2212, %s2197, 256, 256, 16
        $region99: #{gdp_forward.1} parent=87 // pred_fallthru
          _
      $region88: #{gdp_forward.1} parent=5 // pred_fallthru
        _
      %p2218 = scmp.le.s32.totalorder 2, %s35
      // Predicated region
      $region100: #{gdp_forward.1} parent=5 // pred_check
        %p2219 = pneg %p2218
      $region101: #{gdp_forward.1} parent=5 // pred_check_branch
        %2221 = sbr.rel (%p2219) target = $region103
      $region102: #{gdp_forward.1} parent=5 // pred_region
        %s2222 = ssub.s32 %s35, 2
        // Predicated region
        $region104: #{gdp_forward.1} parent=102 // pred_check
          %p2223 = pneg %p426
        $region105: #{gdp_forward.1} parent=102 // pred_check_branch
          %2225 = sbr.rel (%p2223) target = $region107
        $region106: #{gdp_forward.1} parent=102 // pred_region
          %s2226 = sand.u32 %s411, 1
          %s2227 = scalar_lea.sflag [#allocation9], %s2226
          %s2228 = sand.u32 %s411, 1
          %s2229 = smul.addr %s2228, 32
          %s2230 = scalar_lea.vmem [#allocation8], %s2229
          %2232 = dma.done %s2227, 512
        $region107: #{gdp_forward.1} parent=102 // pred_fallthru
          _
      $region103: #{gdp_forward.1} parent=5 // pred_fallthru
        _
    $region6: #{gdp_forward.1} parent=1 // loop_footer
      %s39 = sadd.s32 1, %s35
    $region7: #{gdp_forward.1} parent=1 // loop_footer_branch
      %34 = sbr.rel target = $region3
    $region8: #{gdp_forward.1} parent=1 // loop_exit
      _
    %2233 = vsyncpa [#allocation9], 1
    %s2234 = scalar_lea.sflag [#allocation9], 1
    %2235 = vsyncpa %s2234, 1

</llo_original>
